<compile_context>
chip_gen: v6e
topology: v6e:2x2x1
jax: 0.10.0
libtpu: 0.0.40
codegen_flags: <defaults>
</compile_context>

<pallas_src>
import jax
import jax.numpy as jnp
from jax.experimental import pallas as pl
from jax.experimental.pallas import tpu as pltpu

DIST_EMB_SIZE = 16
DIST_BIN_SIZE = 50
IGNORE_BIN_IDX = DIST_BIN_SIZE          # 50
TABLE_PAD = 128                         # 51 real rows zero-padded to 128 (dense iota / full MXU K)
MASK_SENTINEL = 1e30                    # written into dist where masked
MASK_THRESH = 1e29                      # kernel: x >= MASK_THRESH -> bin 50


def _make_kernel(BB, CHUNK, G, E, compute_dtype):
    GE = G * E
    M = CHUNK * G
    n_chunks = BB // CHUNK

    def kernel(dist_ref, w_ref, out_ref):
        # dist_ref: (BB, G, G) f32   (masked entries pre-filled with MASK_SENTINEL)
        # w_ref:    (G, TABLE_PAD, GE)  block-diagonal embedding table
        # out_ref:  (BB*G, GE)       lane-dense output (GE == 128 for G=8, E=16)
        lane_iota = jax.lax.broadcasted_iota(jnp.int32, (1, TABLE_PAD), 1)

        @pl.loop(0, n_chunks)
        def _chunk(c):
            r = pl.multiple_of(c * CHUNK, CHUNK)
            row = pl.multiple_of(c * M, M)

            x = dist_ref[pl.ds(r, CHUNK), :, :]                    # (CHUNK, G, G)
            # closed-form torch.bucketize(x, [0,50,...,2400], right=True)
            #   == clip(floor(x / 50) + 1, 0, 49)   (true division, do NOT use x*(1/50))
            cat = jnp.floor(x / jnp.float32(50.0)) + jnp.float32(1.0)
            cat = jnp.clip(cat, jnp.float32(0.0), jnp.float32(DIST_BIN_SIZE - 1))
            cat = jnp.where(x >= jnp.float32(MASK_THRESH),
                            jnp.float32(IGNORE_BIN_IDX), cat)
            cat = cat.astype(jnp.int32)
            # leading-dim collapse only (layout preserving): (CHUNK, G, G) -> (CHUNK*G, G)
            cat2 = cat.reshape(M, G)

            # Block-diagonal lookup: out[m, j*E + e] = table[cat2[m, j], e].
            # G standard 2-D MXU matmuls accumulated in f32; result lands directly
            # in the lane-dense output layout (no relayout, no masked stores).
            acc = jnp.zeros((M, GE), jnp.float32)
            for j in range(G):                                     # static unroll
                onehot_j = (cat2[:, j:j + 1] == lane_iota).astype(compute_dtype)
                acc = acc + jnp.dot(onehot_j, w_ref[j],
                                    preferred_element_type=jnp.float32)
            out_ref[pl.ds(row, M), :] = acc.astype(out_ref.dtype)

    return kernel


def _choose_blocking(B):
    """Returns (B_pad, BB, CHUNK). Prefers >= 2 grid steps (v7x megacore)."""
    b8 = ((B + 7) // 8) * 8
    if b8 <= 64:
        return b8, b8, b8
    chunk = 64
    b_pad = ((B + chunk - 1) // chunk) * chunk
    for cand in (1024, 512, 256, 128, 64):
        if b_pad % cand == 0 and b_pad // cand >= 2:
            return b_pad, cand, chunk
    return b_pad, b_pad, chunk


def _build_block_diag_table(emb_table, G, dtype):
    """W[j, k, j*E:(j+1)*E] = table[k], zero elsewhere.  Shape (G, 128, G*E)."""
    E = emb_table.shape[1]
    tbl = jnp.zeros((TABLE_PAD, E), jnp.float32)
    tbl = tbl.at[: emb_table.shape[0]].set(emb_table.astype(jnp.float32))
    W = jnp.zeros((G, TABLE_PAD, G * E), jnp.float32)
    for j in range(G):
        W = W.at[j, :, j * E:(j + 1) * E].set(tbl)
    return W.astype(dtype)


def dist_emb(point_dist_mat, extend_point_masks, emb_table,
             compute_dtype=jnp.float32, out_dtype=jnp.float32):
    """Pallas implementation of DistEmb.forward.

    point_dist_mat: (B, G, G); extend_point_masks: (B, G) bool/0-1;
    emb_table: (DIST_BIN_SIZE + 1, E) f32.  Returns (B, G, G * E) out_dtype.
    """
    point_dist_mat = point_dist_mat.astype(jnp.float32)
    B, G, _ = point_dist_mat.shape
    E = emb_table.shape[1]
    GE = G * E

    # Fold the pairwise-OR mask into the distance input via a sentinel value:
    # removes a whole (B, G, G) f32 input stream (DMA + double-buffered VMEM).
    m = extend_point_masks.astype(bool)
    mask2d = jnp.logical_or(m[:, None, :], m[:, :, None])
    x = jnp.where(mask2d, jnp.float32(MASK_SENTINEL), point_dist_mat)

    W = _build_block_diag_table(emb_table, G, compute_dtype)

    B_pad, BB, CHUNK = _choose_blocking(B)
    if B_pad != B:
        x = jnp.pad(x, ((0, B_pad - B), (0, 0), (0, 0)))

    out2d = pl.pallas_call(
        _make_kernel(BB, CHUNK, G, E, compute_dtype),
        out_shape=jax.ShapeDtypeStruct((B_pad * G, GE), out_dtype),
        grid=(B_pad // BB,),
        in_specs=[
            pl.BlockSpec((BB, G, G), lambda b: (b, 0, 0)),
            pl.BlockSpec((G, TABLE_PAD, GE), lambda b: (0, 0, 0)),
        ],
        out_specs=pl.BlockSpec((BB * G, GE), lambda b: (b, 0)),
        compiler_params=pltpu.CompilerParams(
            dimension_semantics=("parallel",)),
    )(x, W)

    # Row-major, so this slice + reshape is free (no relayout).
    return out2d[: B * G].reshape(B, G, GE)


def dist_emb_ref(point_dist_mat, extend_point_masks, emb_table):
    """Pure-JAX reference mirroring the PyTorch forward exactly."""
    boundaries = jnp.arange(DIST_BIN_SIZE - 1, dtype=jnp.float32) * 50.0
    cat = jnp.searchsorted(boundaries, point_dist_mat.astype(jnp.float32),
                           side="right").astype(jnp.int32)
    masks = extend_point_masks.astype(bool)
    dm = jnp.logical_or(masks[:, None, :], masks[:, :, None])
    cat = jnp.where(dm, jnp.int32(IGNORE_BIN_IDX), cat)
    emb = emb_table.astype(jnp.float32)[cat]          # (B, G, G, E)
    B, G = point_dist_mat.shape[0], point_dist_mat.shape[1]
    return emb.reshape(B, G, -1)


if __name__ == "__main__":
    key = jax.random.PRNGKey(0)
    k1, k2, k3, k4, k5 = jax.random.split(key, 5)

    B, G, E = 2, 8, DIST_EMB_SIZE
    point_dist_mat = jax.random.uniform(
        k1, (B, G, G), jnp.float32, minval=-100.0, maxval=3000.0)
    extend_point_masks = jax.random.bernoulli(k2, 0.3, (B, G))
    # Deterministic parameter init (nn.Embedding default ~ N(0, 1)).
    emb_table = jax.random.normal(k3, (DIST_BIN_SIZE + 1, E), jnp.float32)

    out = jax.block_until_ready(dist_emb(point_dist_mat, extend_point_masks, emb_table))
    ref = dist_emb_ref(point_dist_mat, extend_point_masks, emb_table)
    assert out.shape == (B, G, G * E), out.shape
    assert jnp.allclose(out, ref), "kernel output mismatch vs reference (small batch)"

    # Second config: exercises the multi-step grid + multi-chunk inner loop path.
    B2 = 200
    pd2 = jax.random.uniform(k4, (B2, G, G), jnp.float32, minval=-100.0, maxval=3000.0)
    mk2 = jax.random.bernoulli(k5, 0.3, (B2, G))
    out2 = jax.block_until_ready(dist_emb(pd2, mk2, emb_table))
    ref2 = dist_emb_ref(pd2, mk2, emb_table)
    assert out2.shape == (B2, G, G * E), out2.shape
    assert jnp.allclose(out2, ref2), "kernel output mismatch vs reference (multi-block)"

    print("KERNEL_OK")
</pallas_src>

<mosaic_0001>
module attributes {stable_mosaic.version = 11 : i64} {
  func.func @kernel(%arg0: i32, %arg1: memref<8x8x8xf32, #tpu.memory_space<vmem>>, %arg2: memref<8x128x128xf32, #tpu.memory_space<vmem>>, %arg3: memref<64x128xf32, #tpu.memory_space<vmem>>) attributes {dimension_semantics = [#tpu.dimension_semantics<parallel>], iteration_bounds = array<i64: 1>, scalar_prefetch = 0 : i64, scratch_operands = 0 : i64, tpu.core_type = #tpu.core_type<tc>, window_params = [{transform_indices = @transform_0, window_bounds = array<i64: 8, 8, 8>}, {pipeline_mode = #tpu.pipeline_mode<synchronous>, transform_indices = @transform_1, window_bounds = array<i64: 8, 128, 128>}, {transform_indices = @transform_2, window_bounds = array<i64: 64, 128>}]} {
    %0 = tpu.iota {dimensions = array<i32: 1>} : vector<1x128xi32>
    %c0_i32 = arith.constant 0 : i32
    %c1_i32 = arith.constant 1 : i32
    %1 = arith.muli %c0_i32, %c1_i32 : i32
    %c0_i32_0 = arith.constant 0 : i32
    %2 = arith.addi %c0_i32_0, %1 : i32
    %c8_i32 = arith.constant 8 : i32
    %3 = arith.muli %2, %c8_i32 : i32
    %4 = tpu.assume_multiple %3, 8 : i32
    %c64_i32 = arith.constant 64 : i32
    %5 = arith.muli %2, %c64_i32 : i32
    %6 = tpu.assume_multiple %5, 64 : i32
    %7 = arith.index_cast %4 : i32 to index
    %c0 = arith.constant 0 : index
    %c0_1 = arith.constant 0 : index
    %8 = vector.load %arg1[%7, %c0, %c0_1] : memref<8x8x8xf32, #tpu.memory_space<vmem>>, vector<8x8x8xf32>
    %cst = arith.constant 5.000000e+01 : f32
    %9 = vector.broadcast %cst : f32 to vector<8x8x8xf32>
    %10 = arith.divf %8, %9 : vector<8x8x8xf32>
    %11 = math.floor %10 : vector<8x8x8xf32>
    %cst_2 = arith.constant 1.000000e+00 : f32
    %12 = vector.broadcast %cst_2 : f32 to vector<8x8x8xf32>
    %13 = arith.addf %11, %12 : vector<8x8x8xf32>
    %cst_3 = arith.constant 0.000000e+00 : f32
    %cst_4 = arith.constant 4.900000e+01 : f32
    %14 = vector.broadcast %cst_3 : f32 to vector<8x8x8xf32>
    %15 = arith.maximumf %14, %13 : vector<8x8x8xf32>
    %16 = vector.broadcast %cst_4 : f32 to vector<8x8x8xf32>
    %17 = arith.minimumf %16, %15 : vector<8x8x8xf32>
    %cst_5 = arith.constant 1.000000e+29 : f32
    %18 = vector.broadcast %cst_5 : f32 to vector<8x8x8xf32>
    %19 = arith.cmpf oge, %8, %18 : vector<8x8x8xf32>
    %cst_6 = arith.constant 5.000000e+01 : f32
    %20 = vector.broadcast %cst_6 : f32 to vector<8x8x8xf32>
    %21 = arith.select %19, %20, %17 : vector<8x8x8xi1>, vector<8x8x8xf32>
    %22 = arith.fptosi %21 : vector<8x8x8xf32> to vector<8x8x8xi32>
    %23 = vector.shape_cast %22 : vector<8x8x8xi32> to vector<64x8xi32>
    %cst_7 = arith.constant 0.000000e+00 : f32
    %24 = vector.broadcast %cst_7 : f32 to vector<64x128xf32>
    %25 = vector.extract_strided_slice %23 {offsets = [0, 0], sizes = [64, 1], strides = [1, 1]} : vector<64x8xi32> to vector<64x1xi32>
    %26 = vector.broadcast %25 : vector<64x1xi32> to vector<64x128xi32>
    %27 = vector.broadcast %0 : vector<1x128xi32> to vector<64x128xi32>
    %28 = arith.cmpi eq, %26, %27 : vector<64x128xi32>
    %29 = arith.extui %28 : vector<64x128xi1> to vector<64x128xi32>
    %30 = arith.sitofp %29 : vector<64x128xi32> to vector<64x128xf32>
    %c0_8 = arith.constant 0 : index
    %c0_9 = arith.constant 0 : index
    %c0_10 = arith.constant 0 : index
    %31 = vector.load %arg2[%c0_8, %c0_9, %c0_10] : memref<8x128x128xf32, #tpu.memory_space<vmem>>, vector<1x128x128xf32>
    %32 = vector.shape_cast %31 : vector<1x128x128xf32> to vector<128x128xf32>
    %cst_11 = arith.constant dense<0.000000e+00> : vector<64x128xf32>
    %33 = tpu.matmul %30, %32, %cst_11 {dimension_numbers = #tpu.dot_dimension_numbers<[1], [0], [0], [1], [0, 0, 1, 1], [], []>} : vector<64x128xf32>, vector<128x128xf32>, vector<64x128xf32> -> vector<64x128xf32>
    %34 = arith.addf %24, %33 : vector<64x128xf32>
    %35 = vector.extract_strided_slice %23 {offsets = [0, 1], sizes = [64, 1], strides = [1, 1]} : vector<64x8xi32> to vector<64x1xi32>
    %36 = vector.broadcast %35 : vector<64x1xi32> to vector<64x128xi32>
    %37 = vector.broadcast %0 : vector<1x128xi32> to vector<64x128xi32>
    %38 = arith.cmpi eq, %36, %37 : vector<64x128xi32>
    %39 = arith.extui %38 : vector<64x128xi1> to vector<64x128xi32>
    %40 = arith.sitofp %39 : vector<64x128xi32> to vector<64x128xf32>
    %c1 = arith.constant 1 : index
    %c0_12 = arith.constant 0 : index
    %c0_13 = arith.constant 0 : index
    %41 = vector.load %arg2[%c1, %c0_12, %c0_13] : memref<8x128x128xf32, #tpu.memory_space<vmem>>, vector<1x128x128xf32>
    %42 = vector.shape_cast %41 : vector<1x128x128xf32> to vector<128x128xf32>
    %cst_14 = arith.constant dense<0.000000e+00> : vector<64x128xf32>
    %43 = tpu.matmul %40, %42, %cst_14 {dimension_numbers = #tpu.dot_dimension_numbers<[1], [0], [0], [1], [0, 0, 1, 1], [], []>} : vector<64x128xf32>, vector<128x128xf32>, vector<64x128xf32> -> vector<64x128xf32>
    %44 = arith.addf %34, %43 : vector<64x128xf32>
    %45 = vector.extract_strided_slice %23 {offsets = [0, 2], sizes = [64, 1], strides = [1, 1]} : vector<64x8xi32> to vector<64x1xi32>
    %46 = vector.broadcast %45 : vector<64x1xi32> to vector<64x128xi32>
    %47 = vector.broadcast %0 : vector<1x128xi32> to vector<64x128xi32>
    %48 = arith.cmpi eq, %46, %47 : vector<64x128xi32>
    %49 = arith.extui %48 : vector<64x128xi1> to vector<64x128xi32>
    %50 = arith.sitofp %49 : vector<64x128xi32> to vector<64x128xf32>
    %c2 = arith.constant 2 : index
    %c0_15 = arith.constant 0 : index
    %c0_16 = arith.constant 0 : index
    %51 = vector.load %arg2[%c2, %c0_15, %c0_16] : memref<8x128x128xf32, #tpu.memory_space<vmem>>, vector<1x128x128xf32>
    %52 = vector.shape_cast %51 : vector<1x128x128xf32> to vector<128x128xf32>
    %cst_17 = arith.constant dense<0.000000e+00> : vector<64x128xf32>
    %53 = tpu.matmul %50, %52, %cst_17 {dimension_numbers = #tpu.dot_dimension_numbers<[1], [0], [0], [1], [0, 0, 1, 1], [], []>} : vector<64x128xf32>, vector<128x128xf32>, vector<64x128xf32> -> vector<64x128xf32>
    %54 = arith.addf %44, %53 : vector<64x128xf32>
    %55 = vector.extract_strided_slice %23 {offsets = [0, 3], sizes = [64, 1], strides = [1, 1]} : vector<64x8xi32> to vector<64x1xi32>
    %56 = vector.broadcast %55 : vector<64x1xi32> to vector<64x128xi32>
    %57 = vector.broadcast %0 : vector<1x128xi32> to vector<64x128xi32>
    %58 = arith.cmpi eq, %56, %57 : vector<64x128xi32>
    %59 = arith.extui %58 : vector<64x128xi1> to vector<64x128xi32>
    %60 = arith.sitofp %59 : vector<64x128xi32> to vector<64x128xf32>
    %c3 = arith.constant 3 : index
    %c0_18 = arith.constant 0 : index
    %c0_19 = arith.constant 0 : index
    %61 = vector.load %arg2[%c3, %c0_18, %c0_19] : memref<8x128x128xf32, #tpu.memory_space<vmem>>, vector<1x128x128xf32>
    %62 = vector.shape_cast %61 : vector<1x128x128xf32> to vector<128x128xf32>
    %cst_20 = arith.constant dense<0.000000e+00> : vector<64x128xf32>
    %63 = tpu.matmul %60, %62, %cst_20 {dimension_numbers = #tpu.dot_dimension_numbers<[1], [0], [0], [1], [0, 0, 1, 1], [], []>} : vector<64x128xf32>, vector<128x128xf32>, vector<64x128xf32> -> vector<64x128xf32>
    %64 = arith.addf %54, %63 : vector<64x128xf32>
    %65 = vector.extract_strided_slice %23 {offsets = [0, 4], sizes = [64, 1], strides = [1, 1]} : vector<64x8xi32> to vector<64x1xi32>
    %66 = vector.broadcast %65 : vector<64x1xi32> to vector<64x128xi32>
    %67 = vector.broadcast %0 : vector<1x128xi32> to vector<64x128xi32>
    %68 = arith.cmpi eq, %66, %67 : vector<64x128xi32>
    %69 = arith.extui %68 : vector<64x128xi1> to vector<64x128xi32>
    %70 = arith.sitofp %69 : vector<64x128xi32> to vector<64x128xf32>
    %c4 = arith.constant 4 : index
    %c0_21 = arith.constant 0 : index
    %c0_22 = arith.constant 0 : index
    %71 = vector.load %arg2[%c4, %c0_21, %c0_22] : memref<8x128x128xf32, #tpu.memory_space<vmem>>, vector<1x128x128xf32>
    %72 = vector.shape_cast %71 : vector<1x128x128xf32> to vector<128x128xf32>
    %cst_23 = arith.constant dense<0.000000e+00> : vector<64x128xf32>
    %73 = tpu.matmul %70, %72, %cst_23 {dimension_numbers = #tpu.dot_dimension_numbers<[1], [0], [0], [1], [0, 0, 1, 1], [], []>} : vector<64x128xf32>, vector<128x128xf32>, vector<64x128xf32> -> vector<64x128xf32>
    %74 = arith.addf %64, %73 : vector<64x128xf32>
    %75 = vector.extract_strided_slice %23 {offsets = [0, 5], sizes = [64, 1], strides = [1, 1]} : vector<64x8xi32> to vector<64x1xi32>
    %76 = vector.broadcast %75 : vector<64x1xi32> to vector<64x128xi32>
    %77 = vector.broadcast %0 : vector<1x128xi32> to vector<64x128xi32>
    %78 = arith.cmpi eq, %76, %77 : vector<64x128xi32>
    %79 = arith.extui %78 : vector<64x128xi1> to vector<64x128xi32>
    %80 = arith.sitofp %79 : vector<64x128xi32> to vector<64x128xf32>
    %c5 = arith.constant 5 : index
    %c0_24 = arith.constant 0 : index
    %c0_25 = arith.constant 0 : index
    %81 = vector.load %arg2[%c5, %c0_24, %c0_25] : memref<8x128x128xf32, #tpu.memory_space<vmem>>, vector<1x128x128xf32>
    %82 = vector.shape_cast %81 : vector<1x128x128xf32> to vector<128x128xf32>
    %cst_26 = arith.constant dense<0.000000e+00> : vector<64x128xf32>
    %83 = tpu.matmul %80, %82, %cst_26 {dimension_numbers = #tpu.dot_dimension_numbers<[1], [0], [0], [1], [0, 0, 1, 1], [], []>} : vector<64x128xf32>, vector<128x128xf32>, vector<64x128xf32> -> vector<64x128xf32>
    %84 = arith.addf %74, %83 : vector<64x128xf32>
    %85 = vector.extract_strided_slice %23 {offsets = [0, 6], sizes = [64, 1], strides = [1, 1]} : vector<64x8xi32> to vector<64x1xi32>
    %86 = vector.broadcast %85 : vector<64x1xi32> to vector<64x128xi32>
    %87 = vector.broadcast %0 : vector<1x128xi32> to vector<64x128xi32>
    %88 = arith.cmpi eq, %86, %87 : vector<64x128xi32>
    %89 = arith.extui %88 : vector<64x128xi1> to vector<64x128xi32>
    %90 = arith.sitofp %89 : vector<64x128xi32> to vector<64x128xf32>
    %c6 = arith.constant 6 : index
    %c0_27 = arith.constant 0 : index
    %c0_28 = arith.constant 0 : index
    %91 = vector.load %arg2[%c6, %c0_27, %c0_28] : memref<8x128x128xf32, #tpu.memory_space<vmem>>, vector<1x128x128xf32>
    %92 = vector.shape_cast %91 : vector<1x128x128xf32> to vector<128x128xf32>
    %cst_29 = arith.constant dense<0.000000e+00> : vector<64x128xf32>
    %93 = tpu.matmul %90, %92, %cst_29 {dimension_numbers = #tpu.dot_dimension_numbers<[1], [0], [0], [1], [0, 0, 1, 1], [], []>} : vector<64x128xf32>, vector<128x128xf32>, vector<64x128xf32> -> vector<64x128xf32>
    %94 = arith.addf %84, %93 : vector<64x128xf32>
    %95 = vector.extract_strided_slice %23 {offsets = [0, 7], sizes = [64, 1], strides = [1, 1]} : vector<64x8xi32> to vector<64x1xi32>
    %96 = vector.broadcast %95 : vector<64x1xi32> to vector<64x128xi32>
    %97 = vector.broadcast %0 : vector<1x128xi32> to vector<64x128xi32>
    %98 = arith.cmpi eq, %96, %97 : vector<64x128xi32>
    %99 = arith.extui %98 : vector<64x128xi1> to vector<64x128xi32>
    %100 = arith.sitofp %99 : vector<64x128xi32> to vector<64x128xf32>
    %c7 = arith.constant 7 : index
    %c0_30 = arith.constant 0 : index
    %c0_31 = arith.constant 0 : index
    %101 = vector.load %arg2[%c7, %c0_30, %c0_31] : memref<8x128x128xf32, #tpu.memory_space<vmem>>, vector<1x128x128xf32>
    %102 = vector.shape_cast %101 : vector<1x128x128xf32> to vector<128x128xf32>
    %cst_32 = arith.constant dense<0.000000e+00> : vector<64x128xf32>
    %103 = tpu.matmul %100, %102, %cst_32 {dimension_numbers = #tpu.dot_dimension_numbers<[1], [0], [0], [1], [0, 0, 1, 1], [], []>} : vector<64x128xf32>, vector<128x128xf32>, vector<64x128xf32> -> vector<64x128xf32>
    %104 = arith.addf %94, %103 : vector<64x128xf32>
    %105 = arith.index_cast %6 : i32 to index
    %c0_33 = arith.constant 0 : index
    %106 = vector.load %arg3[%105, %c0_33] : memref<64x128xf32, #tpu.memory_space<vmem>>, vector<64x128xf32>
    tpu.vector_store %arg3[%105, %c0_33], %104 {strides = array<i32>} : memref<64x128xf32, #tpu.memory_space<vmem>>, vector<64x128xf32>,
    %c1_i32_34 = arith.constant 1 : i32
    return
  }
  func.func @transform_0(%arg0: i32) -> (i32, i32, i32) {
    %c0_i32 = arith.constant 0 : i32
    %c0_i32_0 = arith.constant 0 : i32
    %c0_i32_1 = arith.constant 0 : i32
    return %arg0, %c0_i32, %c0_i32_0 : i32, i32, i32
  }
  func.func @transform_1(%arg0: i32) -> (i32, i32, i32) {
    %c0_i32 = arith.constant 0 : i32
    %c0_i32_0 = arith.constant 0 : i32
    %c0_i32_1 = arith.constant 0 : i32
    %c0_i32_2 = arith.constant 0 : i32
    return %c0_i32, %c0_i32_0, %c0_i32_1 : i32, i32, i32
  }
  func.func @transform_2(%arg0: i32) -> (i32, i32) {
    %c0_i32 = arith.constant 0 : i32
    %c0_i32_0 = arith.constant 0 : i32
    return %arg0, %c0_i32 : i32, i32
  }
}

</mosaic_0001>

<llo_original>
// kernel: tpu_custom_call.1
$region0: #{tpu_custom_call.1}
  #allocation0 [shape = 'u32[]', space=smem, size = 0x4, offset = 0x4, fixed_abs, tag = 'smem constant byte address 0x4 - core index']
  #allocation1 [shape = 'u32[144,128]{1,0:T(1,128)}', space=vmem, size = 0x12000, scoped, tag = 'internal scratch']
  %s0 = inlined_call_operand.hbm [shape: f32[8,8,8], index: 0, kind: input, shape index: {}]
  %s1 = inlined_call_operand.hbm [shape: f32[8,128,128], index: 1, kind: input, shape index: {}]
  %s2 = inlined_call_operand.hbm [shape: f32[64,128], index: 2, kind: output, shape index: {}]
  %s3 = sld [smem:[#allocation0]]
  $region26: #{tpu_custom_call.1} parent=0
    _
  %s5 = ssub.s32 1, %s3
  %s6 = scalar_select 0, %s5, %s3
  $region1: #{tpu_custom_call.1} parent=0
    #allocation2 [shape = 'u8[32768]{0}', space=vmem, size = 0x8000, scoped, tag = 'input window, operand 0, single buffered']
    #allocation3 [shape = 's32[1]{0}', space=sflag, size = 0x4, scoped, tag = 'scoped memory for tpu_custom_call.1']
    #allocation4 [shape = 's32[1]{0}', space=sflag, size = 0x4, scoped, tag = 'scoped memory for tpu_custom_call.1']
    #allocation5 [shape = 'u8[524288]{0}', space=vmem, size = 0x80000, scoped, tag = 'input window, operand 1, single buffered']
    #allocation6 [shape = 's32[1]{0}', space=sflag, size = 0x4, scoped, tag = 'scoped memory for tpu_custom_call.1']
    #allocation7 [shape = 'u8[32768]{0}', space=vmem, size = 0x8000, scoped, tag = 'output window, operand 0, single buffered']
    %7 = vsyncpa [#allocation3], 0
    %8 = vsyncpa [#allocation6], 0
    %9 = vsyncpa [#allocation4], 0
    // Predicated region
    $region2: #{tpu_custom_call.1} parent=1 // pred_check
      _
    $region3: #{tpu_custom_call.1} parent=1 // pred_check_branch
      %11 = sbr.rel (0) target = $region5
    $region4: #{tpu_custom_call.1} parent=1 // pred_region
      %s13 = ssub.s32 1024, 1024
      %14 = vsyncadd [#allocation3], %s13
      %s15 = sshll.u32 [#allocation2], 4
      %s16 = int_to_ptr.vmem [resolvable:$true] %s15
      %21 = dma.hbm_to_vmem [thread:$0]  %s0, 1024, %s16, [#allocation3], 128, 128, 8
    $region5: #{tpu_custom_call.1} parent=1 // pred_fallthru
      _
    // Predicated region
    $region6: #{tpu_custom_call.1} parent=1 // pred_check
      _
    $region7: #{tpu_custom_call.1} parent=1 // pred_check_branch
      %23 = sbr.rel (0) target = $region9
    $region8: #{tpu_custom_call.1} parent=1 // pred_region
      %s25 = ssub.s32 16384, 16384
      %26 = vsyncadd [#allocation6], %s25
      %s27 = sshll.u32 [#allocation5], 4
      %s28 = int_to_ptr.vmem [resolvable:$true] %s27
      %33 = dma.hbm_to_vmem [thread:$0]  %s1, 16384, %s28, [#allocation6], 128, 128, 8
    $region9: #{tpu_custom_call.1} parent=1 // pred_fallthru
      _
    // Predicated region
    $region10: #{tpu_custom_call.1} parent=1 // pred_check
      _
    $region11: #{tpu_custom_call.1} parent=1 // pred_check_branch
      %35 = sbr.rel (0) target = $region13
    $region12: #{tpu_custom_call.1} parent=1 // pred_region
      %36 = dma.done [#allocation3], 1024
    $region13: #{tpu_custom_call.1} parent=1 // pred_fallthru
      _
    // Predicated region
    $region14: #{tpu_custom_call.1} parent=1 // pred_check
      _
    $region15: #{tpu_custom_call.1} parent=1 // pred_check_branch
      %38 = sbr.rel (0) target = $region17
    $region16: #{tpu_custom_call.1} parent=1 // pred_region
      %39 = dma.done [#allocation6], 16384
    $region17: #{tpu_custom_call.1} parent=1 // pred_fallthru
      _
    %v40 = vlaneseq
    %v41 = vand.u32 %v40, 127
    %s42 = smul.u32 0, 8
    %s43 = scalar_lea.vmem [#allocation2], %s42
    %v44 = vld [vmem:[%s43] sm:$0xff]
    %v45 = vld [vmem:[%s43 + $0x8] sm:$0xff]
    %v46 = vld [vmem:[%s43 + $0x10] sm:$0xff]
    %v47 = vld [vmem:[%s43 + $0x18] sm:$0xff]
    %v48 = vld [vmem:[%s43 + $0x20] sm:$0xff]
    %v49 = vld [vmem:[%s43 + $0x28] sm:$0xff]
    %v50 = vld [vmem:[%s43 + $0x30] sm:$0xff]
    %v51 = vld [vmem:[%s43 + $0x38] sm:$0xff]
    %v52 = vrcp.pop 50.0
    %v53 = vmul.f32 %v44, %v52
    %v54 = vmul.f32 %v45, %v52
    %v55 = vmul.f32 %v46, %v52
    %v56 = vmul.f32 %v47, %v52
    %v57 = vmul.f32 %v48, %v52
    %v58 = vmul.f32 %v49, %v52
    %v59 = vmul.f32 %v50, %v52
    %v60 = vmul.f32 %v51, %v52
    %v61 = vfloor.f32 %v53
    %v62 = vfloor.f32 %v54
    %v63 = vfloor.f32 %v55
    %v64 = vfloor.f32 %v56
    %v65 = vfloor.f32 %v57
    %v66 = vfloor.f32 %v58
    %v67 = vfloor.f32 %v59
    %v68 = vfloor.f32 %v60
    %v69 = vadd.f32 %v61, 1.0
    %v70 = vadd.f32 %v62, 1.0
    %v71 = vadd.f32 %v63, 1.0
    %v72 = vadd.f32 %v64, 1.0
    %v73 = vadd.f32 %v65, 1.0
    %v74 = vadd.f32 %v66, 1.0
    %v75 = vadd.f32 %v67, 1.0
    %v76 = vadd.f32 %v68, 1.0
    %v77 = vmax.f32 %v69, 0.0
    %v78 = vmax.f32 %v70, 0.0
    %v79 = vmax.f32 %v71, 0.0
    %v80 = vmax.f32 %v72, 0.0
    %v81 = vmax.f32 %v73, 0.0
    %v82 = vmax.f32 %v74, 0.0
    %v83 = vmax.f32 %v75, 0.0
    %v84 = vmax.f32 %v76, 0.0
    %v85 = vmin.f32 %v77, 49.0
    %v86 = vmin.f32 %v78, 49.0
    %v87 = vmin.f32 %v79, 49.0
    %v88 = vmin.f32 %v80, 49.0
    %v89 = vmin.f32 %v81, 49.0
    %v90 = vmin.f32 %v82, 49.0
    %v91 = vmin.f32 %v83, 49.0
    %v92 = vmin.f32 %v84, 49.0
    %vm93 = vcmp.ge.f32.partialorder %v44, 1e+29
    %vm94 = vcmp.ge.f32.partialorder %v45, 1e+29
    %vm95 = vcmp.ge.f32.partialorder %v46, 1e+29
    %vm96 = vcmp.ge.f32.partialorder %v47, 1e+29
    %vm97 = vcmp.ge.f32.partialorder %v48, 1e+29
    %vm98 = vcmp.ge.f32.partialorder %v49, 1e+29
    %vm99 = vcmp.ge.f32.partialorder %v50, 1e+29
    %vm100 = vcmp.ge.f32.partialorder %v51, 1e+29
    %v101 = vsel %vm93, 50.0, %v85
    %v102 = vsel %vm94, 50.0, %v86
    %v103 = vsel %vm95, 50.0, %v87
    %v104 = vsel %vm96, 50.0, %v88
    %v105 = vsel %vm97, 50.0, %v89
    %v106 = vsel %vm98, 50.0, %v90
    %v107 = vsel %vm99, 50.0, %v91
    %v108 = vsel %vm100, 50.0, %v92
    %v109 = vcvt.f32.s32.to.zero.pseudo %v101
    %v110 = vcvt.f32.s32.to.zero.pseudo %v102
    %v111 = vcvt.f32.s32.to.zero.pseudo %v103
    %v112 = vcvt.f32.s32.to.zero.pseudo %v104
    %v113 = vcvt.f32.s32.to.zero.pseudo %v105
    %v114 = vcvt.f32.s32.to.zero.pseudo %v106
    %v115 = vcvt.f32.s32.to.zero.pseudo %v107
    %v116 = vcvt.f32.s32.to.zero.pseudo %v108
    %117 = vset.pattern.permute.xlu0 0
    %118 = vperm.xlu0 %117, %v109
    %v119 = vpop.permute.xlu0 %118
    %120 = vset.pattern.permute.xlu0 0
    %121 = vperm.xlu0 %120, %v110
    %v122 = vpop.permute.xlu0 %121
    %123 = vset.pattern.permute.xlu0 0
    %124 = vperm.xlu0 %123, %v111
    %v125 = vpop.permute.xlu0 %124
    %126 = vset.pattern.permute.xlu0 0
    %127 = vperm.xlu0 %126, %v112
    %v128 = vpop.permute.xlu0 %127
    %129 = vset.pattern.permute.xlu0 0
    %130 = vperm.xlu0 %129, %v113
    %v131 = vpop.permute.xlu0 %130
    %132 = vset.pattern.permute.xlu0 0
    %133 = vperm.xlu0 %132, %v114
    %v134 = vpop.permute.xlu0 %133
    %135 = vset.pattern.permute.xlu0 0
    %136 = vperm.xlu0 %135, %v115
    %v137 = vpop.permute.xlu0 %136
    %138 = vset.pattern.permute.xlu0 0
    %139 = vperm.xlu0 %138, %v116
    %v140 = vpop.permute.xlu0 %139
    %vm141 = vcmp.eq.s32.totalorder %v119, %v41
    %vm142 = vcmp.eq.s32.totalorder %v122, %v41
    %vm143 = vcmp.eq.s32.totalorder %v125, %v41
    %vm144 = vcmp.eq.s32.totalorder %v128, %v41
    %vm145 = vcmp.eq.s32.totalorder %v131, %v41
    %vm146 = vcmp.eq.s32.totalorder %v134, %v41
    %vm147 = vcmp.eq.s32.totalorder %v137, %v41
    %vm148 = vcmp.eq.s32.totalorder %v140, %v41
    %v149 = vsel %vm141, 1, 0
    %v150 = vsel %vm142, 1, 0
    %v151 = vsel %vm143, 1, 0
    %v152 = vsel %vm144, 1, 0
    %v153 = vsel %vm145, 1, 0
    %v154 = vsel %vm146, 1, 0
    %v155 = vsel %vm147, 1, 0
    %v156 = vsel %vm148, 1, 0
    %v157 = vcvt.s32.f32 %v149
    %v158 = vcvt.s32.f32 %v150
    %v159 = vcvt.s32.f32 %v151
    %v160 = vcvt.s32.f32 %v152
    %v161 = vcvt.s32.f32 %v153
    %v162 = vcvt.s32.f32 %v154
    %v163 = vcvt.s32.f32 %v155
    %v164 = vcvt.s32.f32 %v156
    %v165 = vld [vmem:[#allocation5] sm:$0xff]
    %v166 = vld [vmem:[#allocation5 + $0x8] sm:$0xff]
    %v167 = vld [vmem:[#allocation5 + $0x10] sm:$0xff]
    %v168 = vld [vmem:[#allocation5 + $0x18] sm:$0xff]
    %v169 = vld [vmem:[#allocation5 + $0x20] sm:$0xff]
    %v170 = vld [vmem:[#allocation5 + $0x28] sm:$0xff]
    %v171 = vld [vmem:[#allocation5 + $0x30] sm:$0xff]
    %v172 = vld [vmem:[#allocation5 + $0x38] sm:$0xff]
    %v173 = vld [vmem:[#allocation5 + $0x40] sm:$0xff]
    %v174 = vld [vmem:[#allocation5 + $0x48] sm:$0xff]
    %v175 = vld [vmem:[#allocation5 + $0x50] sm:$0xff]
    %v176 = vld [vmem:[#allocation5 + $0x58] sm:$0xff]
    %v177 = vld [vmem:[#allocation5 + $0x60] sm:$0xff]
    %v178 = vld [vmem:[#allocation5 + $0x68] sm:$0xff]
    %v179 = vld [vmem:[#allocation5 + $0x70] sm:$0xff]
    %v180 = vld [vmem:[#allocation5 + $0x78] sm:$0xff]
    %181 = vset.pattern.permute.xlu0 1
    %182 = vperm.xlu0 %181, %v109
    %v183 = vpop.permute.xlu0 %182
    %184 = vset.pattern.permute.xlu0 1
    %185 = vperm.xlu0 %184, %v110
    %v186 = vpop.permute.xlu0 %185
    %187 = vset.pattern.permute.xlu0 1
    %188 = vperm.xlu0 %187, %v111
    %v189 = vpop.permute.xlu0 %188
    %190 = vset.pattern.permute.xlu0 1
    %191 = vperm.xlu0 %190, %v112
    %v192 = vpop.permute.xlu0 %191
    %193 = vset.pattern.permute.xlu0 1
    %194 = vperm.xlu0 %193, %v113
    %v195 = vpop.permute.xlu0 %194
    %196 = vset.pattern.permute.xlu0 1
    %197 = vperm.xlu0 %196, %v114
    %v198 = vpop.permute.xlu0 %197
    %199 = vset.pattern.permute.xlu0 1
    %200 = vperm.xlu0 %199, %v115
    %v201 = vpop.permute.xlu0 %200
    %202 = vset.pattern.permute.xlu0 1
    %203 = vperm.xlu0 %202, %v116
    %v204 = vpop.permute.xlu0 %203
    %vm205 = vcmp.eq.s32.totalorder %v183, %v41
    %vm206 = vcmp.eq.s32.totalorder %v186, %v41
    %vm207 = vcmp.eq.s32.totalorder %v189, %v41
    %vm208 = vcmp.eq.s32.totalorder %v192, %v41
    %vm209 = vcmp.eq.s32.totalorder %v195, %v41
    %vm210 = vcmp.eq.s32.totalorder %v198, %v41
    %vm211 = vcmp.eq.s32.totalorder %v201, %v41
    %vm212 = vcmp.eq.s32.totalorder %v204, %v41
    %v213 = vsel %vm205, 1, 0
    %v214 = vsel %vm206, 1, 0
    %v215 = vsel %vm207, 1, 0
    %v216 = vsel %vm208, 1, 0
    %v217 = vsel %vm209, 1, 0
    %v218 = vsel %vm210, 1, 0
    %v219 = vsel %vm211, 1, 0
    %v220 = vsel %vm212, 1, 0
    %v221 = vcvt.s32.f32 %v213
    %v222 = vcvt.s32.f32 %v214
    %v223 = vcvt.s32.f32 %v215
    %v224 = vcvt.s32.f32 %v216
    %v225 = vcvt.s32.f32 %v217
    %v226 = vcvt.s32.f32 %v218
    %v227 = vcvt.s32.f32 %v219
    %v228 = vcvt.s32.f32 %v220
    %s229 = scalar_lea.vmem [#allocation5], 128
    %v230 = vld [vmem:[%s229] sm:$0xff]
    %v231 = vld [vmem:[%s229 + $0x8] sm:$0xff]
    %v232 = vld [vmem:[%s229 + $0x10] sm:$0xff]
    %v233 = vld [vmem:[%s229 + $0x18] sm:$0xff]
    %v234 = vld [vmem:[%s229 + $0x20] sm:$0xff]
    %v235 = vld [vmem:[%s229 + $0x28] sm:$0xff]
    %v236 = vld [vmem:[%s229 + $0x30] sm:$0xff]
    %v237 = vld [vmem:[%s229 + $0x38] sm:$0xff]
    %v238 = vld [vmem:[%s229 + $0x40] sm:$0xff]
    %v239 = vld [vmem:[%s229 + $0x48] sm:$0xff]
    %v240 = vld [vmem:[%s229 + $0x50] sm:$0xff]
    %v241 = vld [vmem:[%s229 + $0x58] sm:$0xff]
    %v242 = vld [vmem:[%s229 + $0x60] sm:$0xff]
    %v243 = vld [vmem:[%s229 + $0x68] sm:$0xff]
    %v244 = vld [vmem:[%s229 + $0x70] sm:$0xff]
    %v245 = vld [vmem:[%s229 + $0x78] sm:$0xff]
    %246 = vmatprep.subr.mxu0 0.0
    %247 = vmatpush1.msra.mxu0 %v245
    %248 = vmatprep.subr.mxu0 0.0
    %249 = vmatpush1.msra.mxu0 %v244
    %250 = vmatprep.subr.mxu0 0.0
    %251 = vmatpush1.msra.mxu0 %v243
    %252 = vmatprep.subr.mxu0 0.0
    %253 = vmatpush1.msra.mxu0 %v242
    %254 = vmatprep.subr.mxu0 0.0
    %255 = vmatpush1.msra.mxu0 %v241
    %256 = vmatprep.subr.mxu0 0.0
    %257 = vmatpush1.msra.mxu0 %v240
    %258 = vmatprep.subr.mxu0 0.0
    %259 = vmatpush1.msra.mxu0 %v239
    %260 = vmatprep.subr.mxu0 0.0
    %261 = vmatpush1.msra.mxu0 %v238
    %262 = vmatprep.subr.mxu0 0.0
    %263 = vmatpush1.msra.mxu0 %v237
    %264 = vmatprep.subr.mxu0 0.0
    %265 = vmatpush1.msra.mxu0 %v236
    %266 = vmatprep.subr.mxu0 0.0
    %267 = vmatpush1.msra.mxu0 %v235
    %268 = vmatprep.subr.mxu0 0.0
    %269 = vmatpush1.msra.mxu0 %v234
    %270 = vmatprep.subr.mxu0 0.0
    %271 = vmatpush1.msra.mxu0 %v233
    %272 = vmatprep.subr.mxu0 0.0
    %273 = vmatpush1.msra.mxu0 %v232
    %274 = vmatprep.subr.mxu0 0.0
    %275 = vmatpush1.msra.mxu0 %v231
    %276 = vmatprep.subr.mxu0 0.0
    %277 = vmatpush1.msra.mxu0 %v230
    %278 = vmatprep.subr.mxu0 0.0
    %279 = vmatpush2.msra.mxu0 0.0
    %280 = vmatprep.subr.mxu0 0.0
    %281 = vmatpush2.msra.mxu0 0.0
    %282 = vmatprep.subr.mxu0 0.0
    %283 = vmatpush2.msra.mxu0 0.0
    %284 = vmatprep.subr.mxu0 0.0
    %285 = vmatpush2.msra.mxu0 0.0
    %286 = vmatprep.subr.mxu0 0.0
    %287 = vmatpush2.msra.mxu0 0.0
    %288 = vmatprep.subr.mxu0 0.0
    %289 = vmatpush2.msra.mxu0 0.0
    %290 = vmatprep.subr.mxu0 0.0
    %291 = vmatpush2.msra.mxu0 0.0
    %292 = vmatprep.subr.mxu0 0.0
    %293 = vmatpush2.msra.mxu0 0.0
    %294 = vmatprep.subr.mxu0 0.0
    %295 = vmatpush2.msra.mxu0 0.0
    %296 = vmatprep.subr.mxu0 0.0
    %297 = vmatpush2.msra.mxu0 0.0
    %298 = vmatprep.subr.mxu0 0.0
    %299 = vmatpush2.msra.mxu0 0.0
    %300 = vmatprep.subr.mxu0 0.0
    %301 = vmatpush2.msra.mxu0 0.0
    %302 = vmatprep.subr.mxu0 0.0
    %303 = vmatpush2.msra.mxu0 0.0
    %304 = vmatprep.subr.mxu0 0.0
    %305 = vmatpush2.msra.mxu0 0.0
    %306 = vmatprep.subr.mxu0 0.0
    %307 = vmatpush2.msra.mxu0 0.0
    %308 = vmatprep.subr.mxu0 0.0
    %309 = vmatpush2.msra.mxu0 0.0
    %310 = vmatprep.mubr.f32.mxu0 0.0
    %311 = vmatmul.mubr.f32.gmra.mxu0 %v221
    %v312 = vpop.f32.mrf.mxu0
    %v313 = vadd.f32 0.0, %v312
    %v314 = vpop.f32.mrf.mxu0
    %315 = vmatprep.mubr.f32.mxu0 0.0
    %316 = vmatmul.mubr.f32.gmra.mxu0 %v222
    %v317 = vpop.f32.mrf.mxu0
    %v318 = vadd.f32 0.0, %v317
    %v319 = vpop.f32.mrf.mxu0
    %320 = vmatprep.mubr.f32.mxu0 0.0
    %321 = vmatmul.mubr.f32.gmra.mxu0 %v223
    %v322 = vpop.f32.mrf.mxu0
    %v323 = vadd.f32 0.0, %v322
    %v324 = vpop.f32.mrf.mxu0
    %325 = vmatprep.mubr.f32.mxu0 0.0
    %326 = vmatmul.mubr.f32.gmra.mxu0 %v224
    %v327 = vpop.f32.mrf.mxu0
    %v328 = vadd.f32 0.0, %v327
    %v329 = vpop.f32.mrf.mxu0
    %330 = vmatprep.mubr.f32.mxu0 0.0
    %331 = vmatmul.mubr.f32.gmra.mxu0 %v225
    %v332 = vpop.f32.mrf.mxu0
    %v333 = vadd.f32 0.0, %v332
    %v334 = vpop.f32.mrf.mxu0
    %335 = vmatprep.mubr.f32.mxu0 0.0
    %336 = vmatmul.mubr.f32.gmra.mxu0 %v226
    %v337 = vpop.f32.mrf.mxu0
    %v338 = vadd.f32 0.0, %v337
    %v339 = vpop.f32.mrf.mxu0
    %340 = vmatprep.mubr.f32.mxu0 0.0
    %341 = vmatmul.mubr.f32.gmra.mxu0 %v227
    %v342 = vpop.f32.mrf.mxu0
    %v343 = vadd.f32 0.0, %v342
    %v344 = vpop.f32.mrf.mxu0
    %345 = vmatprep.mubr.f32.mxu0 0.0
    %346 = vmatmul.mubr.f32.gmra.mxu0 %v228
    %v347 = vpop.f32.mrf.mxu0
    %v348 = vadd.f32 0.0, %v347
    %v349 = vpop.f32.mrf.mxu0
    %350 = vdwg.mxu0
    %351 = vmatprep.subr.mxu0 0.0
    %352 = vmatpush1.msra.mxu0 %v180
    %353 = vmatprep.subr.mxu0 0.0
    %354 = vmatpush1.msra.mxu0 %v179
    %355 = vmatprep.subr.mxu0 0.0
    %356 = vmatpush1.msra.mxu0 %v178
    %357 = vmatprep.subr.mxu0 0.0
    %358 = vmatpush1.msra.mxu0 %v177
    %359 = vmatprep.subr.mxu0 0.0
    %360 = vmatpush1.msra.mxu0 %v176
    %361 = vmatprep.subr.mxu0 0.0
    %362 = vmatpush1.msra.mxu0 %v175
    %363 = vmatprep.subr.mxu0 0.0
    %364 = vmatpush1.msra.mxu0 %v174
    %365 = vmatprep.subr.mxu0 0.0
    %366 = vmatpush1.msra.mxu0 %v173
    %367 = vmatprep.subr.mxu0 0.0
    %368 = vmatpush1.msra.mxu0 %v172
    %369 = vmatprep.subr.mxu0 0.0
    %370 = vmatpush1.msra.mxu0 %v171
    %371 = vmatprep.subr.mxu0 0.0
    %372 = vmatpush1.msra.mxu0 %v170
    %373 = vmatprep.subr.mxu0 0.0
    %374 = vmatpush1.msra.mxu0 %v169
    %375 = vmatprep.subr.mxu0 0.0
    %376 = vmatpush1.msra.mxu0 %v168
    %377 = vmatprep.subr.mxu0 0.0
    %378 = vmatpush1.msra.mxu0 %v167
    %379 = vmatprep.subr.mxu0 0.0
    %380 = vmatpush1.msra.mxu0 %v166
    %381 = vmatprep.subr.mxu0 0.0
    %382 = vmatpush1.msra.mxu0 %v165
    %383 = vmatprep.subr.mxu0 0.0
    %384 = vmatpush2.msra.mxu0 0.0
    %385 = vmatprep.subr.mxu0 0.0
    %386 = vmatpush2.msra.mxu0 0.0
    %387 = vmatprep.subr.mxu0 0.0
    %388 = vmatpush2.msra.mxu0 0.0
    %389 = vmatprep.subr.mxu0 0.0
    %390 = vmatpush2.msra.mxu0 0.0
    %391 = vmatprep.subr.mxu0 0.0
    %392 = vmatpush2.msra.mxu0 0.0
    %393 = vmatprep.subr.mxu0 0.0
    %394 = vmatpush2.msra.mxu0 0.0
    %395 = vmatprep.subr.mxu0 0.0
    %396 = vmatpush2.msra.mxu0 0.0
    %397 = vmatprep.subr.mxu0 0.0
    %398 = vmatpush2.msra.mxu0 0.0
    %399 = vmatprep.subr.mxu0 0.0
    %400 = vmatpush2.msra.mxu0 0.0
    %401 = vmatprep.subr.mxu0 0.0
    %402 = vmatpush2.msra.mxu0 0.0
    %403 = vmatprep.subr.mxu0 0.0
    %404 = vmatpush2.msra.mxu0 0.0
    %405 = vmatprep.subr.mxu0 0.0
    %406 = vmatpush2.msra.mxu0 0.0
    %407 = vmatprep.subr.mxu0 0.0
    %408 = vmatpush2.msra.mxu0 0.0
    %409 = vmatprep.subr.mxu0 0.0
    %410 = vmatpush2.msra.mxu0 0.0
    %411 = vmatprep.subr.mxu0 0.0
    %412 = vmatpush2.msra.mxu0 0.0
    %413 = vmatprep.subr.mxu0 0.0
    %414 = vmatpush2.msra.mxu0 0.0
    %415 = vmatprep.mubr.f32.mxu0 0.0
    %416 = vmatmul.mubr.f32.gmra.mxu0 %v157
    %v417 = vpop.f32.mrf.mxu0
    %v418 = vadd.f32 %v313, %v417
    %v419 = vpop.f32.mrf.mxu0
    %420 = vmatprep.mubr.f32.mxu0 0.0
    %421 = vmatmul.mubr.f32.gmra.mxu0 %v158
    %v422 = vpop.f32.mrf.mxu0
    %v423 = vadd.f32 %v318, %v422
    %v424 = vpop.f32.mrf.mxu0
    %425 = vmatprep.mubr.f32.mxu0 0.0
    %426 = vmatmul.mubr.f32.gmra.mxu0 %v159
    %v427 = vpop.f32.mrf.mxu0
    %v428 = vadd.f32 %v323, %v427
    %v429 = vpop.f32.mrf.mxu0
    %430 = vmatprep.mubr.f32.mxu0 0.0
    %431 = vmatmul.mubr.f32.gmra.mxu0 %v160
    %v432 = vpop.f32.mrf.mxu0
    %v433 = vadd.f32 %v328, %v432
    %v434 = vpop.f32.mrf.mxu0
    %435 = vmatprep.mubr.f32.mxu0 0.0
    %436 = vmatmul.mubr.f32.gmra.mxu0 %v161
    %v437 = vpop.f32.mrf.mxu0
    %v438 = vadd.f32 %v333, %v437
    %v439 = vpop.f32.mrf.mxu0
    %440 = vmatprep.mubr.f32.mxu0 0.0
    %441 = vmatmul.mubr.f32.gmra.mxu0 %v162
    %v442 = vpop.f32.mrf.mxu0
    %v443 = vadd.f32 %v338, %v442
    %v444 = vpop.f32.mrf.mxu0
    %445 = vmatprep.mubr.f32.mxu0 0.0
    %446 = vmatmul.mubr.f32.gmra.mxu0 %v163
    %v447 = vpop.f32.mrf.mxu0
    %v448 = vadd.f32 %v343, %v447
    %v449 = vpop.f32.mrf.mxu0
    %450 = vmatprep.mubr.f32.mxu0 0.0
    %451 = vmatmul.mubr.f32.gmra.mxu0 %v164
    %v452 = vpop.f32.mrf.mxu0
    %v453 = vadd.f32 %v348, %v452
    %v454 = vpop.f32.mrf.mxu0
    %455 = vdwg.mxu0
    %456 = vset.pattern.permute.xlu0 2
    %457 = vperm.xlu0 %456, %v109
    %v458 = vpop.permute.xlu0 %457
    %459 = vset.pattern.permute.xlu0 2
    %460 = vperm.xlu0 %459, %v110
    %v461 = vpop.permute.xlu0 %460
    %462 = vset.pattern.permute.xlu0 2
    %463 = vperm.xlu0 %462, %v111
    %v464 = vpop.permute.xlu0 %463
    %465 = vset.pattern.permute.xlu0 2
    %466 = vperm.xlu0 %465, %v112
    %v467 = vpop.permute.xlu0 %466
    %468 = vset.pattern.permute.xlu0 2
    %469 = vperm.xlu0 %468, %v113
    %v470 = vpop.permute.xlu0 %469
    %471 = vset.pattern.permute.xlu0 2
    %472 = vperm.xlu0 %471, %v114
    %v473 = vpop.permute.xlu0 %472
    %474 = vset.pattern.permute.xlu0 2
    %475 = vperm.xlu0 %474, %v115
    %v476 = vpop.permute.xlu0 %475
    %477 = vset.pattern.permute.xlu0 2
    %478 = vperm.xlu0 %477, %v116
    %v479 = vpop.permute.xlu0 %478
    %vm480 = vcmp.eq.s32.totalorder %v458, %v41
    %vm481 = vcmp.eq.s32.totalorder %v461, %v41
    %vm482 = vcmp.eq.s32.totalorder %v464, %v41
    %vm483 = vcmp.eq.s32.totalorder %v467, %v41
    %vm484 = vcmp.eq.s32.totalorder %v470, %v41
    %vm485 = vcmp.eq.s32.totalorder %v473, %v41
    %vm486 = vcmp.eq.s32.totalorder %v476, %v41
    %vm487 = vcmp.eq.s32.totalorder %v479, %v41
    %v488 = vsel %vm480, 1, 0
    %v489 = vsel %vm481, 1, 0
    %v490 = vsel %vm482, 1, 0
    %v491 = vsel %vm483, 1, 0
    %v492 = vsel %vm484, 1, 0
    %v493 = vsel %vm485, 1, 0
    %v494 = vsel %vm486, 1, 0
    %v495 = vsel %vm487, 1, 0
    %v496 = vcvt.s32.f32 %v488
    %v497 = vcvt.s32.f32 %v489
    %v498 = vcvt.s32.f32 %v490
    %v499 = vcvt.s32.f32 %v491
    %v500 = vcvt.s32.f32 %v492
    %v501 = vcvt.s32.f32 %v493
    %v502 = vcvt.s32.f32 %v494
    %v503 = vcvt.s32.f32 %v495
    %s504 = scalar_lea.vmem [#allocation5], 256
    %v505 = vld [vmem:[%s504] sm:$0xff]
    %v506 = vld [vmem:[%s504 + $0x8] sm:$0xff]
    %v507 = vld [vmem:[%s504 + $0x10] sm:$0xff]
    %v508 = vld [vmem:[%s504 + $0x18] sm:$0xff]
    %v509 = vld [vmem:[%s504 + $0x20] sm:$0xff]
    %v510 = vld [vmem:[%s504 + $0x28] sm:$0xff]
    %v511 = vld [vmem:[%s504 + $0x30] sm:$0xff]
    %v512 = vld [vmem:[%s504 + $0x38] sm:$0xff]
    %v513 = vld [vmem:[%s504 + $0x40] sm:$0xff]
    %v514 = vld [vmem:[%s504 + $0x48] sm:$0xff]
    %v515 = vld [vmem:[%s504 + $0x50] sm:$0xff]
    %v516 = vld [vmem:[%s504 + $0x58] sm:$0xff]
    %v517 = vld [vmem:[%s504 + $0x60] sm:$0xff]
    %v518 = vld [vmem:[%s504 + $0x68] sm:$0xff]
    %v519 = vld [vmem:[%s504 + $0x70] sm:$0xff]
    %v520 = vld [vmem:[%s504 + $0x78] sm:$0xff]
    %521 = vmatprep.subr.mxu0 0.0
    %522 = vmatpush1.msra.mxu0 %v520
    %523 = vmatprep.subr.mxu0 0.0
    %524 = vmatpush1.msra.mxu0 %v519
    %525 = vmatprep.subr.mxu0 0.0
    %526 = vmatpush1.msra.mxu0 %v518
    %527 = vmatprep.subr.mxu0 0.0
    %528 = vmatpush1.msra.mxu0 %v517
    %529 = vmatprep.subr.mxu0 0.0
    %530 = vmatpush1.msra.mxu0 %v516
    %531 = vmatprep.subr.mxu0 0.0
    %532 = vmatpush1.msra.mxu0 %v515
    %533 = vmatprep.subr.mxu0 0.0
    %534 = vmatpush1.msra.mxu0 %v514
    %535 = vmatprep.subr.mxu0 0.0
    %536 = vmatpush1.msra.mxu0 %v513
    %537 = vmatprep.subr.mxu0 0.0
    %538 = vmatpush1.msra.mxu0 %v512
    %539 = vmatprep.subr.mxu0 0.0
    %540 = vmatpush1.msra.mxu0 %v511
    %541 = vmatprep.subr.mxu0 0.0
    %542 = vmatpush1.msra.mxu0 %v510
    %543 = vmatprep.subr.mxu0 0.0
    %544 = vmatpush1.msra.mxu0 %v509
    %545 = vmatprep.subr.mxu0 0.0
    %546 = vmatpush1.msra.mxu0 %v508
    %547 = vmatprep.subr.mxu0 0.0
    %548 = vmatpush1.msra.mxu0 %v507
    %549 = vmatprep.subr.mxu0 0.0
    %550 = vmatpush1.msra.mxu0 %v506
    %551 = vmatprep.subr.mxu0 0.0
    %552 = vmatpush1.msra.mxu0 %v505
    %553 = vmatprep.subr.mxu0 0.0
    %554 = vmatpush2.msra.mxu0 0.0
    %555 = vmatprep.subr.mxu0 0.0
    %556 = vmatpush2.msra.mxu0 0.0
    %557 = vmatprep.subr.mxu0 0.0
    %558 = vmatpush2.msra.mxu0 0.0
    %559 = vmatprep.subr.mxu0 0.0
    %560 = vmatpush2.msra.mxu0 0.0
    %561 = vmatprep.subr.mxu0 0.0
    %562 = vmatpush2.msra.mxu0 0.0
    %563 = vmatprep.subr.mxu0 0.0
    %564 = vmatpush2.msra.mxu0 0.0
    %565 = vmatprep.subr.mxu0 0.0
    %566 = vmatpush2.msra.mxu0 0.0
    %567 = vmatprep.subr.mxu0 0.0
    %568 = vmatpush2.msra.mxu0 0.0
    %569 = vmatprep.subr.mxu0 0.0
    %570 = vmatpush2.msra.mxu0 0.0
    %571 = vmatprep.subr.mxu0 0.0
    %572 = vmatpush2.msra.mxu0 0.0
    %573 = vmatprep.subr.mxu0 0.0
    %574 = vmatpush2.msra.mxu0 0.0
    %575 = vmatprep.subr.mxu0 0.0
    %576 = vmatpush2.msra.mxu0 0.0
    %577 = vmatprep.subr.mxu0 0.0
    %578 = vmatpush2.msra.mxu0 0.0
    %579 = vmatprep.subr.mxu0 0.0
    %580 = vmatpush2.msra.mxu0 0.0
    %581 = vmatprep.subr.mxu0 0.0
    %582 = vmatpush2.msra.mxu0 0.0
    %583 = vmatprep.subr.mxu0 0.0
    %584 = vmatpush2.msra.mxu0 0.0
    %585 = vmatprep.mubr.f32.mxu0 0.0
    %586 = vmatmul.mubr.f32.gmra.mxu0 %v496
    %v587 = vpop.f32.mrf.mxu0
    %v588 = vadd.f32 0.0, %v587
    %v589 = vpop.f32.mrf.mxu0
    %590 = vmatprep.mubr.f32.mxu0 0.0
    %591 = vmatmul.mubr.f32.gmra.mxu0 %v497
    %v592 = vpop.f32.mrf.mxu0
    %v593 = vadd.f32 0.0, %v592
    %v594 = vpop.f32.mrf.mxu0
    %595 = vmatprep.mubr.f32.mxu0 0.0
    %596 = vmatmul.mubr.f32.gmra.mxu0 %v498
    %v597 = vpop.f32.mrf.mxu0
    %v598 = vadd.f32 0.0, %v597
    %v599 = vpop.f32.mrf.mxu0
    %600 = vmatprep.mubr.f32.mxu0 0.0
    %601 = vmatmul.mubr.f32.gmra.mxu0 %v499
    %v602 = vpop.f32.mrf.mxu0
    %v603 = vadd.f32 0.0, %v602
    %v604 = vpop.f32.mrf.mxu0
    %605 = vmatprep.mubr.f32.mxu0 0.0
    %606 = vmatmul.mubr.f32.gmra.mxu0 %v500
    %v607 = vpop.f32.mrf.mxu0
    %v608 = vadd.f32 0.0, %v607
    %v609 = vpop.f32.mrf.mxu0
    %610 = vmatprep.mubr.f32.mxu0 0.0
    %611 = vmatmul.mubr.f32.gmra.mxu0 %v501
    %v612 = vpop.f32.mrf.mxu0
    %v613 = vadd.f32 0.0, %v612
    %v614 = vpop.f32.mrf.mxu0
    %615 = vmatprep.mubr.f32.mxu0 0.0
    %616 = vmatmul.mubr.f32.gmra.mxu0 %v502
    %v617 = vpop.f32.mrf.mxu0
    %v618 = vadd.f32 0.0, %v617
    %v619 = vpop.f32.mrf.mxu0
    %620 = vmatprep.mubr.f32.mxu0 0.0
    %621 = vmatmul.mubr.f32.gmra.mxu0 %v503
    %v622 = vpop.f32.mrf.mxu0
    %v623 = vadd.f32 0.0, %v622
    %v624 = vpop.f32.mrf.mxu0
    %625 = vdwg.mxu0
    %v626 = vadd.f32 %v418, %v588
    %v627 = vadd.f32 %v423, %v593
    %v628 = vadd.f32 %v428, %v598
    %v629 = vadd.f32 %v433, %v603
    %v630 = vadd.f32 %v438, %v608
    %v631 = vadd.f32 %v443, %v613
    %v632 = vadd.f32 %v448, %v618
    %v633 = vadd.f32 %v453, %v623
    %634 = vset.pattern.permute.xlu0 3
    %635 = vperm.xlu0 %634, %v109
    %v636 = vpop.permute.xlu0 %635
    %637 = vset.pattern.permute.xlu0 3
    %638 = vperm.xlu0 %637, %v110
    %v639 = vpop.permute.xlu0 %638
    %640 = vset.pattern.permute.xlu0 3
    %641 = vperm.xlu0 %640, %v111
    %v642 = vpop.permute.xlu0 %641
    %643 = vset.pattern.permute.xlu0 3
    %644 = vperm.xlu0 %643, %v112
    %v645 = vpop.permute.xlu0 %644
    %646 = vset.pattern.permute.xlu0 3
    %647 = vperm.xlu0 %646, %v113
    %v648 = vpop.permute.xlu0 %647
    %649 = vset.pattern.permute.xlu0 3
    %650 = vperm.xlu0 %649, %v114
    %v651 = vpop.permute.xlu0 %650
    %652 = vset.pattern.permute.xlu0 3
    %653 = vperm.xlu0 %652, %v115
    %v654 = vpop.permute.xlu0 %653
    %655 = vset.pattern.permute.xlu0 3
    %656 = vperm.xlu0 %655, %v116
    %v657 = vpop.permute.xlu0 %656
    %vm658 = vcmp.eq.s32.totalorder %v636, %v41
    %vm659 = vcmp.eq.s32.totalorder %v639, %v41
    %vm660 = vcmp.eq.s32.totalorder %v642, %v41
    %vm661 = vcmp.eq.s32.totalorder %v645, %v41
    %vm662 = vcmp.eq.s32.totalorder %v648, %v41
    %vm663 = vcmp.eq.s32.totalorder %v651, %v41
    %vm664 = vcmp.eq.s32.totalorder %v654, %v41
    %vm665 = vcmp.eq.s32.totalorder %v657, %v41
    %v666 = vsel %vm658, 1, 0
    %v667 = vsel %vm659, 1, 0
    %v668 = vsel %vm660, 1, 0
    %v669 = vsel %vm661, 1, 0
    %v670 = vsel %vm662, 1, 0
    %v671 = vsel %vm663, 1, 0
    %v672 = vsel %vm664, 1, 0
    %v673 = vsel %vm665, 1, 0
    %v674 = vcvt.s32.f32 %v666
    %v675 = vcvt.s32.f32 %v667
    %v676 = vcvt.s32.f32 %v668
    %v677 = vcvt.s32.f32 %v669
    %v678 = vcvt.s32.f32 %v670
    %v679 = vcvt.s32.f32 %v671
    %v680 = vcvt.s32.f32 %v672
    %v681 = vcvt.s32.f32 %v673
    %s682 = scalar_lea.vmem [#allocation5], 384
    %v683 = vld [vmem:[%s682] sm:$0xff]
    %v684 = vld [vmem:[%s682 + $0x8] sm:$0xff]
    %v685 = vld [vmem:[%s682 + $0x10] sm:$0xff]
    %v686 = vld [vmem:[%s682 + $0x18] sm:$0xff]
    %v687 = vld [vmem:[%s682 + $0x20] sm:$0xff]
    %v688 = vld [vmem:[%s682 + $0x28] sm:$0xff]
    %v689 = vld [vmem:[%s682 + $0x30] sm:$0xff]
    %v690 = vld [vmem:[%s682 + $0x38] sm:$0xff]
    %v691 = vld [vmem:[%s682 + $0x40] sm:$0xff]
    %v692 = vld [vmem:[%s682 + $0x48] sm:$0xff]
    %v693 = vld [vmem:[%s682 + $0x50] sm:$0xff]
    %v694 = vld [vmem:[%s682 + $0x58] sm:$0xff]
    %v695 = vld [vmem:[%s682 + $0x60] sm:$0xff]
    %v696 = vld [vmem:[%s682 + $0x68] sm:$0xff]
    %v697 = vld [vmem:[%s682 + $0x70] sm:$0xff]
    %v698 = vld [vmem:[%s682 + $0x78] sm:$0xff]
    %699 = vmatprep.subr.mxu0 0.0
    %700 = vmatpush1.msra.mxu0 %v698
    %701 = vmatprep.subr.mxu0 0.0
    %702 = vmatpush1.msra.mxu0 %v697
    %703 = vmatprep.subr.mxu0 0.0
    %704 = vmatpush1.msra.mxu0 %v696
    %705 = vmatprep.subr.mxu0 0.0
    %706 = vmatpush1.msra.mxu0 %v695
    %707 = vmatprep.subr.mxu0 0.0
    %708 = vmatpush1.msra.mxu0 %v694
    %709 = vmatprep.subr.mxu0 0.0
    %710 = vmatpush1.msra.mxu0 %v693
    %711 = vmatprep.subr.mxu0 0.0
    %712 = vmatpush1.msra.mxu0 %v692
    %713 = vmatprep.subr.mxu0 0.0
    %714 = vmatpush1.msra.mxu0 %v691
    %715 = vmatprep.subr.mxu0 0.0
    %716 = vmatpush1.msra.mxu0 %v690
    %717 = vmatprep.subr.mxu0 0.0
    %718 = vmatpush1.msra.mxu0 %v689
    %719 = vmatprep.subr.mxu0 0.0
    %720 = vmatpush1.msra.mxu0 %v688
    %721 = vmatprep.subr.mxu0 0.0
    %722 = vmatpush1.msra.mxu0 %v687
    %723 = vmatprep.subr.mxu0 0.0
    %724 = vmatpush1.msra.mxu0 %v686
    %725 = vmatprep.subr.mxu0 0.0
    %726 = vmatpush1.msra.mxu0 %v685
    %727 = vmatprep.subr.mxu0 0.0
    %728 = vmatpush1.msra.mxu0 %v684
    %729 = vmatprep.subr.mxu0 0.0
    %730 = vmatpush1.msra.mxu0 %v683
    %731 = vmatprep.subr.mxu0 0.0
    %732 = vmatpush2.msra.mxu0 0.0
    %733 = vmatprep.subr.mxu0 0.0
    %734 = vmatpush2.msra.mxu0 0.0
    %735 = vmatprep.subr.mxu0 0.0
    %736 = vmatpush2.msra.mxu0 0.0
    %737 = vmatprep.subr.mxu0 0.0
    %738 = vmatpush2.msra.mxu0 0.0
    %739 = vmatprep.subr.mxu0 0.0
    %740 = vmatpush2.msra.mxu0 0.0
    %741 = vmatprep.subr.mxu0 0.0
    %742 = vmatpush2.msra.mxu0 0.0
    %743 = vmatprep.subr.mxu0 0.0
    %744 = vmatpush2.msra.mxu0 0.0
    %745 = vmatprep.subr.mxu0 0.0
    %746 = vmatpush2.msra.mxu0 0.0
    %747 = vmatprep.subr.mxu0 0.0
    %748 = vmatpush2.msra.mxu0 0.0
    %749 = vmatprep.subr.mxu0 0.0
    %750 = vmatpush2.msra.mxu0 0.0
    %751 = vmatprep.subr.mxu0 0.0
    %752 = vmatpush2.msra.mxu0 0.0
    %753 = vmatprep.subr.mxu0 0.0
    %754 = vmatpush2.msra.mxu0 0.0
    %755 = vmatprep.subr.mxu0 0.0
    %756 = vmatpush2.msra.mxu0 0.0
    %757 = vmatprep.subr.mxu0 0.0
    %758 = vmatpush2.msra.mxu0 0.0
    %759 = vmatprep.subr.mxu0 0.0
    %760 = vmatpush2.msra.mxu0 0.0
    %761 = vmatprep.subr.mxu0 0.0
    %762 = vmatpush2.msra.mxu0 0.0
    %763 = vmatprep.mubr.f32.mxu0 0.0
    %764 = vmatmul.mubr.f32.gmra.mxu0 %v674
    %v765 = vpop.f32.mrf.mxu0
    %v766 = vadd.f32 0.0, %v765
    %v767 = vpop.f32.mrf.mxu0
    %768 = vmatprep.mubr.f32.mxu0 0.0
    %769 = vmatmul.mubr.f32.gmra.mxu0 %v675
    %v770 = vpop.f32.mrf.mxu0
    %v771 = vadd.f32 0.0, %v770
    %v772 = vpop.f32.mrf.mxu0
    %773 = vmatprep.mubr.f32.mxu0 0.0
    %774 = vmatmul.mubr.f32.gmra.mxu0 %v676
    %v775 = vpop.f32.mrf.mxu0
    %v776 = vadd.f32 0.0, %v775
    %v777 = vpop.f32.mrf.mxu0
    %778 = vmatprep.mubr.f32.mxu0 0.0
    %779 = vmatmul.mubr.f32.gmra.mxu0 %v677
    %v780 = vpop.f32.mrf.mxu0
    %v781 = vadd.f32 0.0, %v780
    %v782 = vpop.f32.mrf.mxu0
    %783 = vmatprep.mubr.f32.mxu0 0.0
    %784 = vmatmul.mubr.f32.gmra.mxu0 %v678
    %v785 = vpop.f32.mrf.mxu0
    %v786 = vadd.f32 0.0, %v785
    %v787 = vpop.f32.mrf.mxu0
    %788 = vmatprep.mubr.f32.mxu0 0.0
    %789 = vmatmul.mubr.f32.gmra.mxu0 %v679
    %v790 = vpop.f32.mrf.mxu0
    %v791 = vadd.f32 0.0, %v790
    %v792 = vpop.f32.mrf.mxu0
    %793 = vmatprep.mubr.f32.mxu0 0.0
    %794 = vmatmul.mubr.f32.gmra.mxu0 %v680
    %v795 = vpop.f32.mrf.mxu0
    %v796 = vadd.f32 0.0, %v795
    %v797 = vpop.f32.mrf.mxu0
    %798 = vmatprep.mubr.f32.mxu0 0.0
    %799 = vmatmul.mubr.f32.gmra.mxu0 %v681
    %v800 = vpop.f32.mrf.mxu0
    %v801 = vadd.f32 0.0, %v800
    %v802 = vpop.f32.mrf.mxu0
    %803 = vdwg.mxu0
    %v804 = vadd.f32 %v626, %v766
    %v805 = vadd.f32 %v627, %v771
    %v806 = vadd.f32 %v628, %v776
    %v807 = vadd.f32 %v629, %v781
    %v808 = vadd.f32 %v630, %v786
    %v809 = vadd.f32 %v631, %v791
    %v810 = vadd.f32 %v632, %v796
    %v811 = vadd.f32 %v633, %v801
    %812 = vset.pattern.permute.xlu0 4
    %813 = vperm.xlu0 %812, %v109
    %v814 = vpop.permute.xlu0 %813
    %815 = vset.pattern.permute.xlu0 4
    %816 = vperm.xlu0 %815, %v110
    %v817 = vpop.permute.xlu0 %816
    %818 = vset.pattern.permute.xlu0 4
    %819 = vperm.xlu0 %818, %v111
    %v820 = vpop.permute.xlu0 %819
    %821 = vset.pattern.permute.xlu0 4
    %822 = vperm.xlu0 %821, %v112
    %v823 = vpop.permute.xlu0 %822
    %824 = vset.pattern.permute.xlu0 4
    %825 = vperm.xlu0 %824, %v113
    %v826 = vpop.permute.xlu0 %825
    %827 = vset.pattern.permute.xlu0 4
    %828 = vperm.xlu0 %827, %v114
    %v829 = vpop.permute.xlu0 %828
    %830 = vset.pattern.permute.xlu0 4
    %831 = vperm.xlu0 %830, %v115
    %v832 = vpop.permute.xlu0 %831
    %833 = vset.pattern.permute.xlu0 4
    %834 = vperm.xlu0 %833, %v116
    %v835 = vpop.permute.xlu0 %834
    %vm836 = vcmp.eq.s32.totalorder %v814, %v41
    %vm837 = vcmp.eq.s32.totalorder %v817, %v41
    %vm838 = vcmp.eq.s32.totalorder %v820, %v41
    %vm839 = vcmp.eq.s32.totalorder %v823, %v41
    %vm840 = vcmp.eq.s32.totalorder %v826, %v41
    %vm841 = vcmp.eq.s32.totalorder %v829, %v41
    %vm842 = vcmp.eq.s32.totalorder %v832, %v41
    %vm843 = vcmp.eq.s32.totalorder %v835, %v41
    %v844 = vsel %vm836, 1, 0
    %v845 = vsel %vm837, 1, 0
    %v846 = vsel %vm838, 1, 0
    %v847 = vsel %vm839, 1, 0
    %v848 = vsel %vm840, 1, 0
    %v849 = vsel %vm841, 1, 0
    %v850 = vsel %vm842, 1, 0
    %v851 = vsel %vm843, 1, 0
    %v852 = vcvt.s32.f32 %v844
    %v853 = vcvt.s32.f32 %v845
    %v854 = vcvt.s32.f32 %v846
    %v855 = vcvt.s32.f32 %v847
    %v856 = vcvt.s32.f32 %v848
    %v857 = vcvt.s32.f32 %v849
    %v858 = vcvt.s32.f32 %v850
    %v859 = vcvt.s32.f32 %v851
    %s860 = scalar_lea.vmem [#allocation5], 512
    %v861 = vld [vmem:[%s860] sm:$0xff]
    %v862 = vld [vmem:[%s860 + $0x8] sm:$0xff]
    %v863 = vld [vmem:[%s860 + $0x10] sm:$0xff]
    %v864 = vld [vmem:[%s860 + $0x18] sm:$0xff]
    %v865 = vld [vmem:[%s860 + $0x20] sm:$0xff]
    %v866 = vld [vmem:[%s860 + $0x28] sm:$0xff]
    %v867 = vld [vmem:[%s860 + $0x30] sm:$0xff]
    %v868 = vld [vmem:[%s860 + $0x38] sm:$0xff]
    %v869 = vld [vmem:[%s860 + $0x40] sm:$0xff]
    %v870 = vld [vmem:[%s860 + $0x48] sm:$0xff]
    %v871 = vld [vmem:[%s860 + $0x50] sm:$0xff]
    %v872 = vld [vmem:[%s860 + $0x58] sm:$0xff]
    %v873 = vld [vmem:[%s860 + $0x60] sm:$0xff]
    %v874 = vld [vmem:[%s860 + $0x68] sm:$0xff]
    %v875 = vld [vmem:[%s860 + $0x70] sm:$0xff]
    %v876 = vld [vmem:[%s860 + $0x78] sm:$0xff]
    %877 = vmatprep.subr.mxu0 0.0
    %878 = vmatpush1.msra.mxu0 %v876
    %879 = vmatprep.subr.mxu0 0.0
    %880 = vmatpush1.msra.mxu0 %v875
    %881 = vmatprep.subr.mxu0 0.0
    %882 = vmatpush1.msra.mxu0 %v874
    %883 = vmatprep.subr.mxu0 0.0
    %884 = vmatpush1.msra.mxu0 %v873
    %885 = vmatprep.subr.mxu0 0.0
    %886 = vmatpush1.msra.mxu0 %v872
    %887 = vmatprep.subr.mxu0 0.0
    %888 = vmatpush1.msra.mxu0 %v871
    %889 = vmatprep.subr.mxu0 0.0
    %890 = vmatpush1.msra.mxu0 %v870
    %891 = vmatprep.subr.mxu0 0.0
    %892 = vmatpush1.msra.mxu0 %v869
    %893 = vmatprep.subr.mxu0 0.0
    %894 = vmatpush1.msra.mxu0 %v868
    %895 = vmatprep.subr.mxu0 0.0
    %896 = vmatpush1.msra.mxu0 %v867
    %897 = vmatprep.subr.mxu0 0.0
    %898 = vmatpush1.msra.mxu0 %v866
    %899 = vmatprep.subr.mxu0 0.0
    %900 = vmatpush1.msra.mxu0 %v865
    %901 = vmatprep.subr.mxu0 0.0
    %902 = vmatpush1.msra.mxu0 %v864
    %903 = vmatprep.subr.mxu0 0.0
    %904 = vmatpush1.msra.mxu0 %v863
    %905 = vmatprep.subr.mxu0 0.0
    %906 = vmatpush1.msra.mxu0 %v862
    %907 = vmatprep.subr.mxu0 0.0
    %908 = vmatpush1.msra.mxu0 %v861
    %909 = vmatprep.subr.mxu0 0.0
    %910 = vmatpush2.msra.mxu0 0.0
    %911 = vmatprep.subr.mxu0 0.0
    %912 = vmatpush2.msra.mxu0 0.0
    %913 = vmatprep.subr.mxu0 0.0
    %914 = vmatpush2.msra.mxu0 0.0
    %915 = vmatprep.subr.mxu0 0.0
    %916 = vmatpush2.msra.mxu0 0.0
    %917 = vmatprep.subr.mxu0 0.0
    %918 = vmatpush2.msra.mxu0 0.0
    %919 = vmatprep.subr.mxu0 0.0
    %920 = vmatpush2.msra.mxu0 0.0
    %921 = vmatprep.subr.mxu0 0.0
    %922 = vmatpush2.msra.mxu0 0.0
    %923 = vmatprep.subr.mxu0 0.0
    %924 = vmatpush2.msra.mxu0 0.0
    %925 = vmatprep.subr.mxu0 0.0
    %926 = vmatpush2.msra.mxu0 0.0
    %927 = vmatprep.subr.mxu0 0.0
    %928 = vmatpush2.msra.mxu0 0.0
    %929 = vmatprep.subr.mxu0 0.0
    %930 = vmatpush2.msra.mxu0 0.0
    %931 = vmatprep.subr.mxu0 0.0
    %932 = vmatpush2.msra.mxu0 0.0
    %933 = vmatprep.subr.mxu0 0.0
    %934 = vmatpush2.msra.mxu0 0.0
    %935 = vmatprep.subr.mxu0 0.0
    %936 = vmatpush2.msra.mxu0 0.0
    %937 = vmatprep.subr.mxu0 0.0
    %938 = vmatpush2.msra.mxu0 0.0
    %939 = vmatprep.subr.mxu0 0.0
    %940 = vmatpush2.msra.mxu0 0.0
    %941 = vmatprep.mubr.f32.mxu0 0.0
    %942 = vmatmul.mubr.f32.gmra.mxu0 %v852
    %v943 = vpop.f32.mrf.mxu0
    %v944 = vadd.f32 0.0, %v943
    %v945 = vpop.f32.mrf.mxu0
    %946 = vmatprep.mubr.f32.mxu0 0.0
    %947 = vmatmul.mubr.f32.gmra.mxu0 %v853
    %v948 = vpop.f32.mrf.mxu0
    %v949 = vadd.f32 0.0, %v948
    %v950 = vpop.f32.mrf.mxu0
    %951 = vmatprep.mubr.f32.mxu0 0.0
    %952 = vmatmul.mubr.f32.gmra.mxu0 %v854
    %v953 = vpop.f32.mrf.mxu0
    %v954 = vadd.f32 0.0, %v953
    %v955 = vpop.f32.mrf.mxu0
    %956 = vmatprep.mubr.f32.mxu0 0.0
    %957 = vmatmul.mubr.f32.gmra.mxu0 %v855
    %v958 = vpop.f32.mrf.mxu0
    %v959 = vadd.f32 0.0, %v958
    %v960 = vpop.f32.mrf.mxu0
    %961 = vmatprep.mubr.f32.mxu0 0.0
    %962 = vmatmul.mubr.f32.gmra.mxu0 %v856
    %v963 = vpop.f32.mrf.mxu0
    %v964 = vadd.f32 0.0, %v963
    %v965 = vpop.f32.mrf.mxu0
    %966 = vmatprep.mubr.f32.mxu0 0.0
    %967 = vmatmul.mubr.f32.gmra.mxu0 %v857
    %v968 = vpop.f32.mrf.mxu0
    %v969 = vadd.f32 0.0, %v968
    %v970 = vpop.f32.mrf.mxu0
    %971 = vmatprep.mubr.f32.mxu0 0.0
    %972 = vmatmul.mubr.f32.gmra.mxu0 %v858
    %v973 = vpop.f32.mrf.mxu0
    %v974 = vadd.f32 0.0, %v973
    %v975 = vpop.f32.mrf.mxu0
    %976 = vmatprep.mubr.f32.mxu0 0.0
    %977 = vmatmul.mubr.f32.gmra.mxu0 %v859
    %v978 = vpop.f32.mrf.mxu0
    %v979 = vadd.f32 0.0, %v978
    %v980 = vpop.f32.mrf.mxu0
    %981 = vdwg.mxu0
    %v982 = vadd.f32 %v804, %v944
    %v983 = vadd.f32 %v805, %v949
    %v984 = vadd.f32 %v806, %v954
    %v985 = vadd.f32 %v807, %v959
    %v986 = vadd.f32 %v808, %v964
    %v987 = vadd.f32 %v809, %v969
    %v988 = vadd.f32 %v810, %v974
    %v989 = vadd.f32 %v811, %v979
    %990 = vset.pattern.permute.xlu0 5
    %991 = vperm.xlu0 %990, %v109
    %v992 = vpop.permute.xlu0 %991
    %993 = vset.pattern.permute.xlu0 5
    %994 = vperm.xlu0 %993, %v110
    %v995 = vpop.permute.xlu0 %994
    %996 = vset.pattern.permute.xlu0 5
    %997 = vperm.xlu0 %996, %v111
    %v998 = vpop.permute.xlu0 %997
    %999 = vset.pattern.permute.xlu0 5
    %1000 = vperm.xlu0 %999, %v112
    %v1001 = vpop.permute.xlu0 %1000
    %1002 = vset.pattern.permute.xlu0 5
    %1003 = vperm.xlu0 %1002, %v113
    %v1004 = vpop.permute.xlu0 %1003
    %1005 = vset.pattern.permute.xlu0 5
    %1006 = vperm.xlu0 %1005, %v114
    %v1007 = vpop.permute.xlu0 %1006
    %1008 = vset.pattern.permute.xlu0 5
    %1009 = vperm.xlu0 %1008, %v115
    %v1010 = vpop.permute.xlu0 %1009
    %1011 = vset.pattern.permute.xlu0 5
    %1012 = vperm.xlu0 %1011, %v116
    %v1013 = vpop.permute.xlu0 %1012
    %vm1014 = vcmp.eq.s32.totalorder %v992, %v41
    %vm1015 = vcmp.eq.s32.totalorder %v995, %v41
    %vm1016 = vcmp.eq.s32.totalorder %v998, %v41
    %vm1017 = vcmp.eq.s32.totalorder %v1001, %v41
    %vm1018 = vcmp.eq.s32.totalorder %v1004, %v41
    %vm1019 = vcmp.eq.s32.totalorder %v1007, %v41
    %vm1020 = vcmp.eq.s32.totalorder %v1010, %v41
    %vm1021 = vcmp.eq.s32.totalorder %v1013, %v41
    %v1022 = vsel %vm1014, 1, 0
    %v1023 = vsel %vm1015, 1, 0
    %v1024 = vsel %vm1016, 1, 0
    %v1025 = vsel %vm1017, 1, 0
    %v1026 = vsel %vm1018, 1, 0
    %v1027 = vsel %vm1019, 1, 0
    %v1028 = vsel %vm1020, 1, 0
    %v1029 = vsel %vm1021, 1, 0
    %v1030 = vcvt.s32.f32 %v1022
    %v1031 = vcvt.s32.f32 %v1023
    %v1032 = vcvt.s32.f32 %v1024
    %v1033 = vcvt.s32.f32 %v1025
    %v1034 = vcvt.s32.f32 %v1026
    %v1035 = vcvt.s32.f32 %v1027
    %v1036 = vcvt.s32.f32 %v1028
    %v1037 = vcvt.s32.f32 %v1029
    %s1038 = scalar_lea.vmem [#allocation5], 640
    %v1039 = vld [vmem:[%s1038] sm:$0xff]
    %v1040 = vld [vmem:[%s1038 + $0x8] sm:$0xff]
    %v1041 = vld [vmem:[%s1038 + $0x10] sm:$0xff]
    %v1042 = vld [vmem:[%s1038 + $0x18] sm:$0xff]
    %v1043 = vld [vmem:[%s1038 + $0x20] sm:$0xff]
    %v1044 = vld [vmem:[%s1038 + $0x28] sm:$0xff]
    %v1045 = vld [vmem:[%s1038 + $0x30] sm:$0xff]
    %v1046 = vld [vmem:[%s1038 + $0x38] sm:$0xff]
    %v1047 = vld [vmem:[%s1038 + $0x40] sm:$0xff]
    %v1048 = vld [vmem:[%s1038 + $0x48] sm:$0xff]
    %v1049 = vld [vmem:[%s1038 + $0x50] sm:$0xff]
    %v1050 = vld [vmem:[%s1038 + $0x58] sm:$0xff]
    %v1051 = vld [vmem:[%s1038 + $0x60] sm:$0xff]
    %v1052 = vld [vmem:[%s1038 + $0x68] sm:$0xff]
    %v1053 = vld [vmem:[%s1038 + $0x70] sm:$0xff]
    %v1054 = vld [vmem:[%s1038 + $0x78] sm:$0xff]
    %1055 = vmatprep.subr.mxu0 0.0
    %1056 = vmatpush1.msra.mxu0 %v1054
    %1057 = vmatprep.subr.mxu0 0.0
    %1058 = vmatpush1.msra.mxu0 %v1053
    %1059 = vmatprep.subr.mxu0 0.0
    %1060 = vmatpush1.msra.mxu0 %v1052
    %1061 = vmatprep.subr.mxu0 0.0
    %1062 = vmatpush1.msra.mxu0 %v1051
    %1063 = vmatprep.subr.mxu0 0.0
    %1064 = vmatpush1.msra.mxu0 %v1050
    %1065 = vmatprep.subr.mxu0 0.0
    %1066 = vmatpush1.msra.mxu0 %v1049
    %1067 = vmatprep.subr.mxu0 0.0
    %1068 = vmatpush1.msra.mxu0 %v1048
    %1069 = vmatprep.subr.mxu0 0.0
    %1070 = vmatpush1.msra.mxu0 %v1047
    %1071 = vmatprep.subr.mxu0 0.0
    %1072 = vmatpush1.msra.mxu0 %v1046
    %1073 = vmatprep.subr.mxu0 0.0
    %1074 = vmatpush1.msra.mxu0 %v1045
    %1075 = vmatprep.subr.mxu0 0.0
    %1076 = vmatpush1.msra.mxu0 %v1044
    %1077 = vmatprep.subr.mxu0 0.0
    %1078 = vmatpush1.msra.mxu0 %v1043
    %1079 = vmatprep.subr.mxu0 0.0
    %1080 = vmatpush1.msra.mxu0 %v1042
    %1081 = vmatprep.subr.mxu0 0.0
    %1082 = vmatpush1.msra.mxu0 %v1041
    %1083 = vmatprep.subr.mxu0 0.0
    %1084 = vmatpush1.msra.mxu0 %v1040
    %1085 = vmatprep.subr.mxu0 0.0
    %1086 = vmatpush1.msra.mxu0 %v1039
    %1087 = vmatprep.subr.mxu0 0.0
    %1088 = vmatpush2.msra.mxu0 0.0
    %1089 = vmatprep.subr.mxu0 0.0
    %1090 = vmatpush2.msra.mxu0 0.0
    %1091 = vmatprep.subr.mxu0 0.0
    %1092 = vmatpush2.msra.mxu0 0.0
    %1093 = vmatprep.subr.mxu0 0.0
    %1094 = vmatpush2.msra.mxu0 0.0
    %1095 = vmatprep.subr.mxu0 0.0
    %1096 = vmatpush2.msra.mxu0 0.0
    %1097 = vmatprep.subr.mxu0 0.0
    %1098 = vmatpush2.msra.mxu0 0.0
    %1099 = vmatprep.subr.mxu0 0.0
    %1100 = vmatpush2.msra.mxu0 0.0
    %1101 = vmatprep.subr.mxu0 0.0
    %1102 = vmatpush2.msra.mxu0 0.0
    %1103 = vmatprep.subr.mxu0 0.0
    %1104 = vmatpush2.msra.mxu0 0.0
    %1105 = vmatprep.subr.mxu0 0.0
    %1106 = vmatpush2.msra.mxu0 0.0
    %1107 = vmatprep.subr.mxu0 0.0
    %1108 = vmatpush2.msra.mxu0 0.0
    %1109 = vmatprep.subr.mxu0 0.0
    %1110 = vmatpush2.msra.mxu0 0.0
    %1111 = vmatprep.subr.mxu0 0.0
    %1112 = vmatpush2.msra.mxu0 0.0
    %1113 = vmatprep.subr.mxu0 0.0
    %1114 = vmatpush2.msra.mxu0 0.0
    %1115 = vmatprep.subr.mxu0 0.0
    %1116 = vmatpush2.msra.mxu0 0.0
    %1117 = vmatprep.subr.mxu0 0.0
    %1118 = vmatpush2.msra.mxu0 0.0
    %1119 = vmatprep.mubr.f32.mxu0 0.0
    %1120 = vmatmul.mubr.f32.gmra.mxu0 %v1030
    %v1121 = vpop.f32.mrf.mxu0
    %v1122 = vadd.f32 0.0, %v1121
    %v1123 = vpop.f32.mrf.mxu0
    %1124 = vmatprep.mubr.f32.mxu0 0.0
    %1125 = vmatmul.mubr.f32.gmra.mxu0 %v1031
    %v1126 = vpop.f32.mrf.mxu0
    %v1127 = vadd.f32 0.0, %v1126
    %v1128 = vpop.f32.mrf.mxu0
    %1129 = vmatprep.mubr.f32.mxu0 0.0
    %1130 = vmatmul.mubr.f32.gmra.mxu0 %v1032
    %v1131 = vpop.f32.mrf.mxu0
    %v1132 = vadd.f32 0.0, %v1131
    %v1133 = vpop.f32.mrf.mxu0
    %1134 = vmatprep.mubr.f32.mxu0 0.0
    %1135 = vmatmul.mubr.f32.gmra.mxu0 %v1033
    %v1136 = vpop.f32.mrf.mxu0
    %v1137 = vadd.f32 0.0, %v1136
    %v1138 = vpop.f32.mrf.mxu0
    %1139 = vmatprep.mubr.f32.mxu0 0.0
    %1140 = vmatmul.mubr.f32.gmra.mxu0 %v1034
    %v1141 = vpop.f32.mrf.mxu0
    %v1142 = vadd.f32 0.0, %v1141
    %v1143 = vpop.f32.mrf.mxu0
    %1144 = vmatprep.mubr.f32.mxu0 0.0
    %1145 = vmatmul.mubr.f32.gmra.mxu0 %v1035
    %v1146 = vpop.f32.mrf.mxu0
    %v1147 = vadd.f32 0.0, %v1146
    %v1148 = vpop.f32.mrf.mxu0
    %1149 = vmatprep.mubr.f32.mxu0 0.0
    %1150 = vmatmul.mubr.f32.gmra.mxu0 %v1036
    %v1151 = vpop.f32.mrf.mxu0
    %v1152 = vadd.f32 0.0, %v1151
    %v1153 = vpop.f32.mrf.mxu0
    %1154 = vmatprep.mubr.f32.mxu0 0.0
    %1155 = vmatmul.mubr.f32.gmra.mxu0 %v1037
    %v1156 = vpop.f32.mrf.mxu0
    %v1157 = vadd.f32 0.0, %v1156
    %v1158 = vpop.f32.mrf.mxu0
    %1159 = vdwg.mxu0
    %v1160 = vadd.f32 %v982, %v1122
    %v1161 = vadd.f32 %v983, %v1127
    %v1162 = vadd.f32 %v984, %v1132
    %v1163 = vadd.f32 %v985, %v1137
    %v1164 = vadd.f32 %v986, %v1142
    %v1165 = vadd.f32 %v987, %v1147
    %v1166 = vadd.f32 %v988, %v1152
    %v1167 = vadd.f32 %v989, %v1157
    %1168 = vset.pattern.permute.xlu0 6
    %1169 = vperm.xlu0 %1168, %v109
    %v1170 = vpop.permute.xlu0 %1169
    %1171 = vset.pattern.permute.xlu0 6
    %1172 = vperm.xlu0 %1171, %v110
    %v1173 = vpop.permute.xlu0 %1172
    %1174 = vset.pattern.permute.xlu0 6
    %1175 = vperm.xlu0 %1174, %v111
    %v1176 = vpop.permute.xlu0 %1175
    %1177 = vset.pattern.permute.xlu0 6
    %1178 = vperm.xlu0 %1177, %v112
    %v1179 = vpop.permute.xlu0 %1178
    %1180 = vset.pattern.permute.xlu0 6
    %1181 = vperm.xlu0 %1180, %v113
    %v1182 = vpop.permute.xlu0 %1181
    %1183 = vset.pattern.permute.xlu0 6
    %1184 = vperm.xlu0 %1183, %v114
    %v1185 = vpop.permute.xlu0 %1184
    %1186 = vset.pattern.permute.xlu0 6
    %1187 = vperm.xlu0 %1186, %v115
    %v1188 = vpop.permute.xlu0 %1187
    %1189 = vset.pattern.permute.xlu0 6
    %1190 = vperm.xlu0 %1189, %v116
    %v1191 = vpop.permute.xlu0 %1190
    %vm1192 = vcmp.eq.s32.totalorder %v1170, %v41
    %vm1193 = vcmp.eq.s32.totalorder %v1173, %v41
    %vm1194 = vcmp.eq.s32.totalorder %v1176, %v41
    %vm1195 = vcmp.eq.s32.totalorder %v1179, %v41
    %vm1196 = vcmp.eq.s32.totalorder %v1182, %v41
    %vm1197 = vcmp.eq.s32.totalorder %v1185, %v41
    %vm1198 = vcmp.eq.s32.totalorder %v1188, %v41
    %vm1199 = vcmp.eq.s32.totalorder %v1191, %v41
    %v1200 = vsel %vm1192, 1, 0
    %v1201 = vsel %vm1193, 1, 0
    %v1202 = vsel %vm1194, 1, 0
    %v1203 = vsel %vm1195, 1, 0
    %v1204 = vsel %vm1196, 1, 0
    %v1205 = vsel %vm1197, 1, 0
    %v1206 = vsel %vm1198, 1, 0
    %v1207 = vsel %vm1199, 1, 0
    %v1208 = vcvt.s32.f32 %v1200
    %v1209 = vcvt.s32.f32 %v1201
    %v1210 = vcvt.s32.f32 %v1202
    %v1211 = vcvt.s32.f32 %v1203
    %v1212 = vcvt.s32.f32 %v1204
    %v1213 = vcvt.s32.f32 %v1205
    %v1214 = vcvt.s32.f32 %v1206
    %v1215 = vcvt.s32.f32 %v1207
    %s1216 = scalar_lea.vmem [#allocation5], 768
    %v1217 = vld [vmem:[%s1216] sm:$0xff]
    %v1218 = vld [vmem:[%s1216 + $0x8] sm:$0xff]
    %v1219 = vld [vmem:[%s1216 + $0x10] sm:$0xff]
    %v1220 = vld [vmem:[%s1216 + $0x18] sm:$0xff]
    %v1221 = vld [vmem:[%s1216 + $0x20] sm:$0xff]
    %v1222 = vld [vmem:[%s1216 + $0x28] sm:$0xff]
    %v1223 = vld [vmem:[%s1216 + $0x30] sm:$0xff]
    %v1224 = vld [vmem:[%s1216 + $0x38] sm:$0xff]
    %v1225 = vld [vmem:[%s1216 + $0x40] sm:$0xff]
    %v1226 = vld [vmem:[%s1216 + $0x48] sm:$0xff]
    %v1227 = vld [vmem:[%s1216 + $0x50] sm:$0xff]
    %v1228 = vld [vmem:[%s1216 + $0x58] sm:$0xff]
    %v1229 = vld [vmem:[%s1216 + $0x60] sm:$0xff]
    %v1230 = vld [vmem:[%s1216 + $0x68] sm:$0xff]
    %v1231 = vld [vmem:[%s1216 + $0x70] sm:$0xff]
    %v1232 = vld [vmem:[%s1216 + $0x78] sm:$0xff]
    %1233 = vmatprep.subr.mxu0 0.0
    %1234 = vmatpush1.msra.mxu0 %v1232
    %1235 = vmatprep.subr.mxu0 0.0
    %1236 = vmatpush1.msra.mxu0 %v1231
    %1237 = vmatprep.subr.mxu0 0.0
    %1238 = vmatpush1.msra.mxu0 %v1230
    %1239 = vmatprep.subr.mxu0 0.0
    %1240 = vmatpush1.msra.mxu0 %v1229
    %1241 = vmatprep.subr.mxu0 0.0
    %1242 = vmatpush1.msra.mxu0 %v1228
    %1243 = vmatprep.subr.mxu0 0.0
    %1244 = vmatpush1.msra.mxu0 %v1227
    %1245 = vmatprep.subr.mxu0 0.0
    %1246 = vmatpush1.msra.mxu0 %v1226
    %1247 = vmatprep.subr.mxu0 0.0
    %1248 = vmatpush1.msra.mxu0 %v1225
    %1249 = vmatprep.subr.mxu0 0.0
    %1250 = vmatpush1.msra.mxu0 %v1224
    %1251 = vmatprep.subr.mxu0 0.0
    %1252 = vmatpush1.msra.mxu0 %v1223
    %1253 = vmatprep.subr.mxu0 0.0
    %1254 = vmatpush1.msra.mxu0 %v1222
    %1255 = vmatprep.subr.mxu0 0.0
    %1256 = vmatpush1.msra.mxu0 %v1221
    %1257 = vmatprep.subr.mxu0 0.0
    %1258 = vmatpush1.msra.mxu0 %v1220
    %1259 = vmatprep.subr.mxu0 0.0
    %1260 = vmatpush1.msra.mxu0 %v1219
    %1261 = vmatprep.subr.mxu0 0.0
    %1262 = vmatpush1.msra.mxu0 %v1218
    %1263 = vmatprep.subr.mxu0 0.0
    %1264 = vmatpush1.msra.mxu0 %v1217
    %1265 = vmatprep.subr.mxu0 0.0
    %1266 = vmatpush2.msra.mxu0 0.0
    %1267 = vmatprep.subr.mxu0 0.0
    %1268 = vmatpush2.msra.mxu0 0.0
    %1269 = vmatprep.subr.mxu0 0.0
    %1270 = vmatpush2.msra.mxu0 0.0
    %1271 = vmatprep.subr.mxu0 0.0
    %1272 = vmatpush2.msra.mxu0 0.0
    %1273 = vmatprep.subr.mxu0 0.0
    %1274 = vmatpush2.msra.mxu0 0.0
    %1275 = vmatprep.subr.mxu0 0.0
    %1276 = vmatpush2.msra.mxu0 0.0
    %1277 = vmatprep.subr.mxu0 0.0
    %1278 = vmatpush2.msra.mxu0 0.0
    %1279 = vmatprep.subr.mxu0 0.0
    %1280 = vmatpush2.msra.mxu0 0.0
    %1281 = vmatprep.subr.mxu0 0.0
    %1282 = vmatpush2.msra.mxu0 0.0
    %1283 = vmatprep.subr.mxu0 0.0
    %1284 = vmatpush2.msra.mxu0 0.0
    %1285 = vmatprep.subr.mxu0 0.0
    %1286 = vmatpush2.msra.mxu0 0.0
    %1287 = vmatprep.subr.mxu0 0.0
    %1288 = vmatpush2.msra.mxu0 0.0
    %1289 = vmatprep.subr.mxu0 0.0
    %1290 = vmatpush2.msra.mxu0 0.0
    %1291 = vmatprep.subr.mxu0 0.0
    %1292 = vmatpush2.msra.mxu0 0.0
    %1293 = vmatprep.subr.mxu0 0.0
    %1294 = vmatpush2.msra.mxu0 0.0
    %1295 = vmatprep.subr.mxu0 0.0
    %1296 = vmatpush2.msra.mxu0 0.0
    %1297 = vmatprep.mubr.f32.mxu0 0.0
    %1298 = vmatmul.mubr.f32.gmra.mxu0 %v1208
    %v1299 = vpop.f32.mrf.mxu0
    %v1300 = vadd.f32 0.0, %v1299
    %v1301 = vpop.f32.mrf.mxu0
    %1302 = vmatprep.mubr.f32.mxu0 0.0
    %1303 = vmatmul.mubr.f32.gmra.mxu0 %v1209
    %v1304 = vpop.f32.mrf.mxu0
    %v1305 = vadd.f32 0.0, %v1304
    %v1306 = vpop.f32.mrf.mxu0
    %1307 = vmatprep.mubr.f32.mxu0 0.0
    %1308 = vmatmul.mubr.f32.gmra.mxu0 %v1210
    %v1309 = vpop.f32.mrf.mxu0
    %v1310 = vadd.f32 0.0, %v1309
    %v1311 = vpop.f32.mrf.mxu0
    %1312 = vmatprep.mubr.f32.mxu0 0.0
    %1313 = vmatmul.mubr.f32.gmra.mxu0 %v1211
    %v1314 = vpop.f32.mrf.mxu0
    %v1315 = vadd.f32 0.0, %v1314
    %v1316 = vpop.f32.mrf.mxu0
    %1317 = vmatprep.mubr.f32.mxu0 0.0
    %1318 = vmatmul.mubr.f32.gmra.mxu0 %v1212
    %v1319 = vpop.f32.mrf.mxu0
    %v1320 = vadd.f32 0.0, %v1319
    %v1321 = vpop.f32.mrf.mxu0
    %1322 = vmatprep.mubr.f32.mxu0 0.0
    %1323 = vmatmul.mubr.f32.gmra.mxu0 %v1213
    %v1324 = vpop.f32.mrf.mxu0
    %v1325 = vadd.f32 0.0, %v1324
    %v1326 = vpop.f32.mrf.mxu0
    %1327 = vmatprep.mubr.f32.mxu0 0.0
    %1328 = vmatmul.mubr.f32.gmra.mxu0 %v1214
    %v1329 = vpop.f32.mrf.mxu0
    %v1330 = vadd.f32 0.0, %v1329
    %v1331 = vpop.f32.mrf.mxu0
    %1332 = vmatprep.mubr.f32.mxu0 0.0
    %1333 = vmatmul.mubr.f32.gmra.mxu0 %v1215
    %v1334 = vpop.f32.mrf.mxu0
    %v1335 = vadd.f32 0.0, %v1334
    %v1336 = vpop.f32.mrf.mxu0
    %1337 = vdwg.mxu0
    %v1338 = vadd.f32 %v1160, %v1300
    %v1339 = vadd.f32 %v1161, %v1305
    %v1340 = vadd.f32 %v1162, %v1310
    %v1341 = vadd.f32 %v1163, %v1315
    %v1342 = vadd.f32 %v1164, %v1320
    %v1343 = vadd.f32 %v1165, %v1325
    %v1344 = vadd.f32 %v1166, %v1330
    %v1345 = vadd.f32 %v1167, %v1335
    %1346 = vset.pattern.permute.xlu0 7
    %1347 = vperm.xlu0 %1346, %v109
    %v1348 = vpop.permute.xlu0 %1347
    %1349 = vset.pattern.permute.xlu0 7
    %1350 = vperm.xlu0 %1349, %v110
    %v1351 = vpop.permute.xlu0 %1350
    %1352 = vset.pattern.permute.xlu0 7
    %1353 = vperm.xlu0 %1352, %v111
    %v1354 = vpop.permute.xlu0 %1353
    %1355 = vset.pattern.permute.xlu0 7
    %1356 = vperm.xlu0 %1355, %v112
    %v1357 = vpop.permute.xlu0 %1356
    %1358 = vset.pattern.permute.xlu0 7
    %1359 = vperm.xlu0 %1358, %v113
    %v1360 = vpop.permute.xlu0 %1359
    %1361 = vset.pattern.permute.xlu0 7
    %1362 = vperm.xlu0 %1361, %v114
    %v1363 = vpop.permute.xlu0 %1362
    %1364 = vset.pattern.permute.xlu0 7
    %1365 = vperm.xlu0 %1364, %v115
    %v1366 = vpop.permute.xlu0 %1365
    %1367 = vset.pattern.permute.xlu0 7
    %1368 = vperm.xlu0 %1367, %v116
    %v1369 = vpop.permute.xlu0 %1368
    %vm1370 = vcmp.eq.s32.totalorder %v1348, %v41
    %vm1371 = vcmp.eq.s32.totalorder %v1351, %v41
    %vm1372 = vcmp.eq.s32.totalorder %v1354, %v41
    %vm1373 = vcmp.eq.s32.totalorder %v1357, %v41
    %vm1374 = vcmp.eq.s32.totalorder %v1360, %v41
    %vm1375 = vcmp.eq.s32.totalorder %v1363, %v41
    %vm1376 = vcmp.eq.s32.totalorder %v1366, %v41
    %vm1377 = vcmp.eq.s32.totalorder %v1369, %v41
    %v1378 = vsel %vm1370, 1, 0
    %v1379 = vsel %vm1371, 1, 0
    %v1380 = vsel %vm1372, 1, 0
    %v1381 = vsel %vm1373, 1, 0
    %v1382 = vsel %vm1374, 1, 0
    %v1383 = vsel %vm1375, 1, 0
    %v1384 = vsel %vm1376, 1, 0
    %v1385 = vsel %vm1377, 1, 0
    %v1386 = vcvt.s32.f32 %v1378
    %v1387 = vcvt.s32.f32 %v1379
    %v1388 = vcvt.s32.f32 %v1380
    %v1389 = vcvt.s32.f32 %v1381
    %v1390 = vcvt.s32.f32 %v1382
    %v1391 = vcvt.s32.f32 %v1383
    %v1392 = vcvt.s32.f32 %v1384
    %v1393 = vcvt.s32.f32 %v1385
    %s1394 = scalar_lea.vmem [#allocation5], 896
    %v1395 = vld [vmem:[%s1394] sm:$0xff]
    %v1396 = vld [vmem:[%s1394 + $0x8] sm:$0xff]
    %v1397 = vld [vmem:[%s1394 + $0x10] sm:$0xff]
    %v1398 = vld [vmem:[%s1394 + $0x18] sm:$0xff]
    %v1399 = vld [vmem:[%s1394 + $0x20] sm:$0xff]
    %v1400 = vld [vmem:[%s1394 + $0x28] sm:$0xff]
    %v1401 = vld [vmem:[%s1394 + $0x30] sm:$0xff]
    %v1402 = vld [vmem:[%s1394 + $0x38] sm:$0xff]
    %v1403 = vld [vmem:[%s1394 + $0x40] sm:$0xff]
    %v1404 = vld [vmem:[%s1394 + $0x48] sm:$0xff]
    %v1405 = vld [vmem:[%s1394 + $0x50] sm:$0xff]
    %v1406 = vld [vmem:[%s1394 + $0x58] sm:$0xff]
    %v1407 = vld [vmem:[%s1394 + $0x60] sm:$0xff]
    %v1408 = vld [vmem:[%s1394 + $0x68] sm:$0xff]
    %v1409 = vld [vmem:[%s1394 + $0x70] sm:$0xff]
    %v1410 = vld [vmem:[%s1394 + $0x78] sm:$0xff]
    %1411 = vmatprep.subr.mxu0 0.0
    %1412 = vmatpush1.msra.mxu0 %v1410
    %1413 = vmatprep.subr.mxu0 0.0
    %1414 = vmatpush1.msra.mxu0 %v1409
    %1415 = vmatprep.subr.mxu0 0.0
    %1416 = vmatpush1.msra.mxu0 %v1408
    %1417 = vmatprep.subr.mxu0 0.0
    %1418 = vmatpush1.msra.mxu0 %v1407
    %1419 = vmatprep.subr.mxu0 0.0
    %1420 = vmatpush1.msra.mxu0 %v1406
    %1421 = vmatprep.subr.mxu0 0.0
    %1422 = vmatpush1.msra.mxu0 %v1405
    %1423 = vmatprep.subr.mxu0 0.0
    %1424 = vmatpush1.msra.mxu0 %v1404
    %1425 = vmatprep.subr.mxu0 0.0
    %1426 = vmatpush1.msra.mxu0 %v1403
    %1427 = vmatprep.subr.mxu0 0.0
    %1428 = vmatpush1.msra.mxu0 %v1402
    %1429 = vmatprep.subr.mxu0 0.0
    %1430 = vmatpush1.msra.mxu0 %v1401
    %1431 = vmatprep.subr.mxu0 0.0
    %1432 = vmatpush1.msra.mxu0 %v1400
    %1433 = vmatprep.subr.mxu0 0.0
    %1434 = vmatpush1.msra.mxu0 %v1399
    %1435 = vmatprep.subr.mxu0 0.0
    %1436 = vmatpush1.msra.mxu0 %v1398
    %1437 = vmatprep.subr.mxu0 0.0
    %1438 = vmatpush1.msra.mxu0 %v1397
    %1439 = vmatprep.subr.mxu0 0.0
    %1440 = vmatpush1.msra.mxu0 %v1396
    %1441 = vmatprep.subr.mxu0 0.0
    %1442 = vmatpush1.msra.mxu0 %v1395
    %1443 = vmatprep.subr.mxu0 0.0
    %1444 = vmatpush2.msra.mxu0 0.0
    %1445 = vmatprep.subr.mxu0 0.0
    %1446 = vmatpush2.msra.mxu0 0.0
    %1447 = vmatprep.subr.mxu0 0.0
    %1448 = vmatpush2.msra.mxu0 0.0
    %1449 = vmatprep.subr.mxu0 0.0
    %1450 = vmatpush2.msra.mxu0 0.0
    %1451 = vmatprep.subr.mxu0 0.0
    %1452 = vmatpush2.msra.mxu0 0.0
    %1453 = vmatprep.subr.mxu0 0.0
    %1454 = vmatpush2.msra.mxu0 0.0
    %1455 = vmatprep.subr.mxu0 0.0
    %1456 = vmatpush2.msra.mxu0 0.0
    %1457 = vmatprep.subr.mxu0 0.0
    %1458 = vmatpush2.msra.mxu0 0.0
    %1459 = vmatprep.subr.mxu0 0.0
    %1460 = vmatpush2.msra.mxu0 0.0
    %1461 = vmatprep.subr.mxu0 0.0
    %1462 = vmatpush2.msra.mxu0 0.0
    %1463 = vmatprep.subr.mxu0 0.0
    %1464 = vmatpush2.msra.mxu0 0.0
    %1465 = vmatprep.subr.mxu0 0.0
    %1466 = vmatpush2.msra.mxu0 0.0
    %1467 = vmatprep.subr.mxu0 0.0
    %1468 = vmatpush2.msra.mxu0 0.0
    %1469 = vmatprep.subr.mxu0 0.0
    %1470 = vmatpush2.msra.mxu0 0.0
    %1471 = vmatprep.subr.mxu0 0.0
    %1472 = vmatpush2.msra.mxu0 0.0
    %1473 = vmatprep.subr.mxu0 0.0
    %1474 = vmatpush2.msra.mxu0 0.0
    %1475 = vmatprep.mubr.f32.mxu0 0.0
    %1476 = vmatmul.mubr.f32.gmra.mxu0 %v1386
    %v1477 = vpop.f32.mrf.mxu0
    %v1478 = vadd.f32 0.0, %v1477
    %v1479 = vpop.f32.mrf.mxu0
    %1480 = vmatprep.mubr.f32.mxu0 0.0
    %1481 = vmatmul.mubr.f32.gmra.mxu0 %v1387
    %v1482 = vpop.f32.mrf.mxu0
    %v1483 = vadd.f32 0.0, %v1482
    %v1484 = vpop.f32.mrf.mxu0
    %1485 = vmatprep.mubr.f32.mxu0 0.0
    %1486 = vmatmul.mubr.f32.gmra.mxu0 %v1388
    %v1487 = vpop.f32.mrf.mxu0
    %v1488 = vadd.f32 0.0, %v1487
    %v1489 = vpop.f32.mrf.mxu0
    %1490 = vmatprep.mubr.f32.mxu0 0.0
    %1491 = vmatmul.mubr.f32.gmra.mxu0 %v1389
    %v1492 = vpop.f32.mrf.mxu0
    %v1493 = vadd.f32 0.0, %v1492
    %v1494 = vpop.f32.mrf.mxu0
    %1495 = vmatprep.mubr.f32.mxu0 0.0
    %1496 = vmatmul.mubr.f32.gmra.mxu0 %v1390
    %v1497 = vpop.f32.mrf.mxu0
    %v1498 = vadd.f32 0.0, %v1497
    %v1499 = vpop.f32.mrf.mxu0
    %1500 = vmatprep.mubr.f32.mxu0 0.0
    %1501 = vmatmul.mubr.f32.gmra.mxu0 %v1391
    %v1502 = vpop.f32.mrf.mxu0
    %v1503 = vadd.f32 0.0, %v1502
    %v1504 = vpop.f32.mrf.mxu0
    %1505 = vmatprep.mubr.f32.mxu0 0.0
    %1506 = vmatmul.mubr.f32.gmra.mxu0 %v1392
    %v1507 = vpop.f32.mrf.mxu0
    %v1508 = vadd.f32 0.0, %v1507
    %v1509 = vpop.f32.mrf.mxu0
    %1510 = vmatprep.mubr.f32.mxu0 0.0
    %1511 = vmatmul.mubr.f32.gmra.mxu0 %v1393
    %v1512 = vpop.f32.mrf.mxu0
    %v1513 = vadd.f32 0.0, %v1512
    %v1514 = vpop.f32.mrf.mxu0
    %1515 = vdwg.mxu0
    %v1516 = vadd.f32 %v1338, %v1478
    %v1517 = vadd.f32 %v1339, %v1483
    %v1518 = vadd.f32 %v1340, %v1488
    %v1519 = vadd.f32 %v1341, %v1493
    %v1520 = vadd.f32 %v1342, %v1498
    %v1521 = vadd.f32 %v1343, %v1503
    %v1522 = vadd.f32 %v1344, %v1508
    %v1523 = vadd.f32 %v1345, %v1513
    %1524 = vst [vmem:[#allocation7] sm:$0xff] %v1516
    %1525 = vst [vmem:[#allocation7 + $0x8] sm:$0xff] %v1517
    %1526 = vst [vmem:[#allocation7 + $0x10] sm:$0xff] %v1518
    %1527 = vst [vmem:[#allocation7 + $0x18] sm:$0xff] %v1519
    %1528 = vst [vmem:[#allocation7 + $0x20] sm:$0xff] %v1520
    %1529 = vst [vmem:[#allocation7 + $0x28] sm:$0xff] %v1521
    %1530 = vst [vmem:[#allocation7 + $0x30] sm:$0xff] %v1522
    %1531 = vst [vmem:[#allocation7 + $0x38] sm:$0xff] %v1523
    // Predicated region
    $region18: #{tpu_custom_call.1} parent=1 // pred_check
      _
    $region19: #{tpu_custom_call.1} parent=1 // pred_check_branch
      %1533 = sbr.rel (0) target = $region21
    $region20: #{tpu_custom_call.1} parent=1 // pred_region
      %s1535 = ssub.s32 1024, 1024
      %1536 = vsyncadd [#allocation4], %s1535
      %s1537 = sshll.u32 [#allocation7], 4
      %s1538 = int_to_ptr.vmem [resolvable:$true] %s1537
      %1543 = dma.vmem_to_hbm [thread:$0]  %s1538, 1024, %s2, [#allocation4], 128, 128, 8
    $region21: #{tpu_custom_call.1} parent=1 // pred_fallthru
      _
    // Predicated region
    $region22: #{tpu_custom_call.1} parent=1 // pred_check
      _
    $region23: #{tpu_custom_call.1} parent=1 // pred_check_branch
      %1545 = sbr.rel (0) target = $region25
    $region24: #{tpu_custom_call.1} parent=1 // pred_region
      %1546 = dma.done [#allocation4], 1024
    $region25: #{tpu_custom_call.1} parent=1 // pred_fallthru
      _
    %1547 = vsyncpa [#allocation3], 1
    %1548 = vsyncpa [#allocation6], 1
    %1549 = vsyncpa [#allocation4], 1

</llo_original>
